<compile_context>
chip_gen: v7x
topology: tpu7x:2x2x1
jax: 0.10.0
libtpu: 0.0.40
codegen_flags: <defaults>
</compile_context>

<pallas_src>
import functools

import jax
import jax.numpy as jnp
from jax import lax
from jax.experimental import pallas as pl
from jax.experimental.pallas import tpu as pltpu


def _round_up(x, m):
    return (x + m - 1) // m * m


def _device_kind():
    try:
        return jax.devices()[0].device_kind.lower()
    except Exception:
        return ""


def _vmem_limit_bytes():
    """Generation-aware scoped-VMEM limit (leave headroom on v7x's 64 MiB/TC)."""
    cap = None
    try:
        cap = int(pltpu.get_tpu_info().vmem_capacity_bytes)
    except Exception:
        cap = None
    if cap is None:
        cap = 64 * 1024 * 1024 if "v7" in _device_kind() else 128 * 1024 * 1024
    limit = max(32 * 1024 * 1024, int(cap * 0.55))
    return min(64 * 1024 * 1024, limit)


def _preferred_lane_tile():
    """Output-channel tile width: 256 on 2x256^2-MXU chips (v6e/v7x), else 128."""
    kind = _device_kind()
    if "v6" in kind or "v7" in kind:
        return 256
    return 128


# ----------------------------- Conv2d path ---------------------------------
def _conv_im2col_kernel(x_ref, w_ref, mb_ref, o_ref, *, h_out, w_out, sh, sw,
                        kh_tot, kw_tot, c_in):
    # Small-Cin (stem) path: fuse KH*KW taps into ONE matmul with K = KH*KW*Cin.
    # x_ref:  (1, Hp, Wp, Cin)     w_ref: (KH*KW*Cin, TC)
    # mb_ref: (2, TC)  row0 = mask, row1 = bias*mask
    # o_ref:  (1, Hout, Wout, TC)
    ximg = x_ref[0]
    hw = h_out * w_out
    taps = []
    for kh in range(kh_tot):
        for kw in range(kw_tot):
            patch = lax.slice(
                ximg, (kh, kw, 0),
                (kh + (h_out - 1) * sh + 1, kw + (w_out - 1) * sw + 1, c_in),
                (sh, sw, 1))
            taps.append(patch.reshape(hw, c_in))
    patches = jnp.concatenate(taps, axis=1) if len(taps) > 1 else taps[0]
    acc = jnp.dot(patches, w_ref[...], preferred_element_type=jnp.float32)
    y = acc * mb_ref[0:1, :] + mb_ref[1:2, :]          # == (acc + b) * mask
    o_ref[0] = y.reshape(h_out, w_out, -1).astype(o_ref.dtype)


def _conv_pertap_kernel(x_ref, w_ref, mb_ref, o_ref, *, h_out, w_out, sh, sw,
                        kh_tot, kw_tot, c_in):
    # Large-Cin path: per-tap MXU accumulation (K = Cin >= 128), no im2col
    # temporaries / concatenate in VMEM.
    # x_ref: (1, Hp, Wp, Cin)   w_ref: (KH, KW, Cin, TC)   mb_ref: (2, TC)
    ximg = x_ref[0]
    hw = h_out * w_out
    acc = jnp.zeros((hw, o_ref.shape[-1]), jnp.float32)
    for kh in range(kh_tot):
        for kw in range(kw_tot):
            patch = lax.slice(
                ximg, (kh, kw, 0),
                (kh + (h_out - 1) * sh + 1, kw + (w_out - 1) * sw + 1, c_in),
                (sh, sw, 1)).reshape(hw, c_in)
            acc = acc + jnp.dot(patch, w_ref[kh, kw],
                                preferred_element_type=jnp.float32)
    y = acc * mb_ref[0:1, :] + mb_ref[1:2, :]
    o_ref[0] = y.reshape(h_out, w_out, -1).astype(o_ref.dtype)


def masked_conv2d_nhwc(x_nhwc, w_oihw, bias, mask, stride=(1, 1), padding=(1, 1),
                       compute_dtype=None):
    """NHWC entry point (preferred for chained layers: no per-layer transposes)."""
    n, h, w, c_in = x_nhwc.shape
    c_out, c_in_w, kh, kw = w_oihw.shape
    assert c_in_w == c_in
    sh, sw = stride
    ph, pw = padding
    h_out = (h + 2 * ph - kh) // sh + 1
    w_out = (w + 2 * pw - kw) // sw + 1
    out_dtype = x_nhwc.dtype
    cdt = compute_dtype if compute_dtype is not None else x_nhwc.dtype
    if bias is None:
        bias = jnp.zeros((c_out,), jnp.float32)

    # Lane-dense Cout tiling, MXU-width aware (256 on v6e/v7x, 128 on v5e).
    tile_c = min(_preferred_lane_tile(), _round_up(c_out, 128))
    c_pad = _round_up(c_out, tile_c)
    n_ct = c_pad // tile_c

    x_pad = jnp.pad(x_nhwc, ((0, 0), (ph, ph), (pw, pw), (0, 0))).astype(cdt)
    hp, wp = h + 2 * ph, w + 2 * pw

    # mask / bias*mask packed into one (2, Cpad) f32 input.
    m_row = mask.astype(jnp.float32).reshape(1, c_out)
    b_row = (bias.astype(jnp.float32) * mask.astype(jnp.float32)).reshape(1, c_out)
    mb2d = jnp.pad(jnp.concatenate([m_row, b_row], axis=0),
                   ((0, 0), (0, c_pad - c_out)))

    per_tap = c_in >= 128
    if per_tap:
        # OIHW -> (KH, KW, Cin, Cout), Cout zero-padded.
        w_k = jnp.transpose(w_oihw, (2, 3, 1, 0))
        w_k = jnp.pad(w_k, ((0, 0), (0, 0), (0, 0), (0, c_pad - c_out))).astype(cdt)
        w_block = (kh, kw, c_in, tile_c)
        w_idx = lambda j: (0, 0, 0, j)
        kern = _conv_pertap_kernel
    else:
        # OIHW -> (KH*KW*Cin, Cout) im2col weight.
        w_k = jnp.transpose(w_oihw, (2, 3, 1, 0)).reshape(kh * kw * c_in, c_out)
        w_k = jnp.pad(w_k, ((0, 0), (0, c_pad - c_out))).astype(cdt)
        w_block = (kh * kw * c_in, tile_c)
        w_idx = lambda j: (0, j)
        kern = _conv_im2col_kernel

    kernel = functools.partial(kern, h_out=h_out, w_out=w_out, sh=sh, sw=sw,
                               kh_tot=kh, kw_tot=kw, c_in=c_in)

    # Adaptive grid order: keep the LARGER of {weight tile, image block} block
    # index constant along the inner grid axis so it stays VMEM-resident.
    itemsize = jnp.dtype(cdt).itemsize
    w_tile_bytes = kh * kw * c_in * tile_c * itemsize
    x_blk_bytes = hp * wp * c_in * itemsize
    weight_resident = w_tile_bytes > x_blk_bytes

    if weight_resident:          # Cout tile outer, batch inner (deep layers)
        grid = (n_ct, n)
        x_map = lambda j, b: (b, 0, 0, 0)
        w_map = lambda j, b: w_idx(j)
        mb_map = lambda j, b: (0, j)
        o_map = lambda j, b: (b, 0, 0, j)
    else:                        # batch outer, Cout tile inner (big images)
        grid = (n, n_ct)
        x_map = lambda b, j: (b, 0, 0, 0)
        w_map = lambda b, j: w_idx(j)
        mb_map = lambda b, j: (0, j)
        o_map = lambda b, j: (b, 0, 0, j)

    flops = 2 * n * h_out * w_out * kh * kw * c_in * c_pad
    bytes_acc = int(x_pad.size * x_pad.dtype.itemsize
                    + w_k.size * w_k.dtype.itemsize
                    + n * h_out * w_out * c_pad * jnp.dtype(out_dtype).itemsize)

    out = pl.pallas_call(
        kernel,
        out_shape=jax.ShapeDtypeStruct((n, h_out, w_out, c_pad), out_dtype),
        grid_spec=pltpu.PrefetchScalarGridSpec(
            num_scalar_prefetch=0,
            grid=grid,
            in_specs=[
                pl.BlockSpec((1, hp, wp, c_in), x_map),
                pl.BlockSpec(w_block, w_map),
                pl.BlockSpec((2, tile_c), mb_map),
            ],
            out_specs=pl.BlockSpec((1, h_out, w_out, tile_c), o_map),
        ),
        compiler_params=pltpu.CompilerParams(
            dimension_semantics=("parallel", "parallel"),
            vmem_limit_bytes=_vmem_limit_bytes()),
        cost_estimate=pl.CostEstimate(flops=flops, transcendentals=0,
                                      bytes_accessed=bytes_acc),
    )(x_pad, w_k, mb2d)

    return out[..., :c_out]      # unpad Cout, stays NHWC


def masked_conv2d(x_nchw, w_oihw, bias, mask, stride=(1, 1), padding=(1, 1),
                  compute_dtype=None):
    """PyTorch-layout (NCHW/OIHW) entry point; layout plumbing only here."""
    x_nhwc = jnp.transpose(x_nchw, (0, 2, 3, 1))
    y = masked_conv2d_nhwc(x_nhwc, w_oihw, bias, mask, stride, padding,
                           compute_dtype)
    return jnp.transpose(y, (0, 3, 1, 2))


# ----------------------------- Linear path ----------------------------------
def _linear_kernel_multi_k(x_ref, wt_ref, mb_ref, o_ref, acc_ref):
    # x_ref: (tm, tk)  wt_ref: (tk, tn)  mb_ref: (2, tn)  acc_ref: (tm, tn) f32
    k = pl.program_id(2)

    @pl.when(k == 0)
    def _():
        acc_ref[...] = jnp.zeros_like(acc_ref)

    acc_ref[...] += jnp.dot(x_ref[...], wt_ref[...],
                            preferred_element_type=jnp.float32)

    @pl.when(k == pl.num_programs(2) - 1)
    def _():
        o_ref[...] = (acc_ref[...] * mb_ref[0:1, :]
                      + mb_ref[1:2, :]).astype(o_ref.dtype)


def _linear_kernel_single_k(x_ref, wt_ref, mb_ref, o_ref):
    # Whole contraction in one tile: no scratch accumulator, no RMW.
    acc = jnp.dot(x_ref[...], wt_ref[...], preferred_element_type=jnp.float32)
    o_ref[...] = (acc * mb_ref[0:1, :] + mb_ref[1:2, :]).astype(o_ref.dtype)


def masked_linear(x, w_fin_fout, bias, mask, *, compute_dtype=None,
                  tm=None, tn=None, tk=None):
    """y = (x @ W + b) * mask, with W already stored as (Fin, Fout).

    Pass the weight pre-transposed once at parameter-setup time so no HBM
    transpose is re-materialized per forward call.
    """
    b, f_in = x.shape
    f_in2, f_out = w_fin_fout.shape
    assert f_in2 == f_in
    out_dtype = x.dtype
    cdt = compute_dtype if compute_dtype is not None else x.dtype
    if bias is None:
        bias = jnp.zeros((f_out,), jnp.float32)

    if tm is None:
        tm = min(512, _round_up(b, 8))
    if tn is None:
        tn = min(2 * _preferred_lane_tile(), _round_up(f_out, 128))
    if tk is None:
        tk = min(1024, _round_up(f_in, 128))
    mp = _round_up(b, tm)
    kp = _round_up(f_in, tk)
    np_ = _round_up(f_out, tn)

    xp = jnp.pad(x, ((0, mp - b), (0, kp - f_in))).astype(cdt)
    w_pad = jnp.pad(w_fin_fout, ((0, kp - f_in), (0, np_ - f_out))).astype(cdt)
    m_row = mask.astype(jnp.float32).reshape(1, f_out)
    b_row = (bias.astype(jnp.float32) * mask.astype(jnp.float32)).reshape(1, f_out)
    mb2d = jnp.pad(jnp.concatenate([m_row, b_row], axis=0),
                   ((0, 0), (0, np_ - f_out)))

    n_k = kp // tk
    flops = 2 * mp * kp * np_
    bytes_acc = int(xp.size * xp.dtype.itemsize
                    + w_pad.size * w_pad.dtype.itemsize
                    + mp * np_ * jnp.dtype(out_dtype).itemsize)
    vmem_limit = _vmem_limit_bytes()

    if n_k == 1:
        out = pl.pallas_call(
            _linear_kernel_single_k,
            out_shape=jax.ShapeDtypeStruct((mp, np_), out_dtype),
            grid_spec=pltpu.PrefetchScalarGridSpec(
                num_scalar_prefetch=0,
                grid=(mp // tm, np_ // tn),
                in_specs=[
                    pl.BlockSpec((tm, tk), lambda i, j: (i, 0)),
                    pl.BlockSpec((tk, tn), lambda i, j: (0, j)),
                    pl.BlockSpec((2, tn), lambda i, j: (0, j)),
                ],
                out_specs=pl.BlockSpec((tm, tn), lambda i, j: (i, j)),
            ),
            compiler_params=pltpu.CompilerParams(
                dimension_semantics=("parallel", "parallel"),
                vmem_limit_bytes=vmem_limit),
            cost_estimate=pl.CostEstimate(flops=flops, transcendentals=0,
                                          bytes_accessed=bytes_acc),
        )(xp, w_pad, mb2d)
    else:
        out = pl.pallas_call(
            _linear_kernel_multi_k,
            out_shape=jax.ShapeDtypeStruct((mp, np_), out_dtype),
            grid_spec=pltpu.PrefetchScalarGridSpec(
                num_scalar_prefetch=0,
                grid=(mp // tm, np_ // tn, n_k),
                in_specs=[
                    pl.BlockSpec((tm, tk), lambda i, j, k: (i, k)),
                    pl.BlockSpec((tk, tn), lambda i, j, k: (k, j)),
                    pl.BlockSpec((2, tn), lambda i, j, k: (0, j)),
                ],
                out_specs=pl.BlockSpec((tm, tn), lambda i, j, k: (i, j)),
                scratch_shapes=[pltpu.VMEM((tm, tn), jnp.float32)],
            ),
            compiler_params=pltpu.CompilerParams(
                dimension_semantics=("parallel", "parallel", "arbitrary"),
                vmem_limit_bytes=vmem_limit),
            cost_estimate=pl.CostEstimate(flops=flops, transcendentals=0,
                                          bytes_accessed=bytes_acc),
        )(xp, w_pad, mb2d)
    return out[:b, :f_out]


# ------------------------------- Demo ----------------------------------------
if __name__ == "__main__":
    key = jax.random.PRNGKey(0)
    k1, k2, k3, k4, k5, k6, k7, k8, k9, k10 = jax.random.split(key, 10)

    def conv_ref(xx, ww, bb, mm, stride, padding):
        mw = ww * mm[:, None, None, None]
        mb = bb * mm
        return lax.conv_general_dilated(
            xx, mw, window_strides=stride,
            padding=[(padding[0], padding[0]), (padding[1], padding[1])],
            dimension_numbers=("NCHW", "OIHW", "NCHW")) + mb[None, :, None, None]

    # --- MaskedLayer wrapping Conv2d(4 -> 8, 3x3): small-Cin im2col path ---
    N, C_in, H, W = 2, 4, 16, 16
    C_out, KH, KW = 8, 3, 3
    x = jax.random.normal(k1, (N, C_in, H, W), jnp.float32)               # NCHW
    conv_w = 0.1 * jax.random.normal(k2, (C_out, C_in, KH, KW), jnp.float32)
    conv_b = 0.1 * jax.random.normal(k3, (C_out,), jnp.float32)
    conv_mask = jnp.array([1, 1, 1, 0, 1, 0, 1, 0], jnp.float32)          # channel mask

    # stride 1, pad 1
    y1 = jax.block_until_ready(
        masked_conv2d(x, conv_w, conv_b, conv_mask, (1, 1), (1, 1)))
    r1 = conv_ref(x, conv_w, conv_b, conv_mask, (1, 1), (1, 1))
    assert y1.shape == (N, C_out, H, W)
    assert jnp.allclose(y1, r1, atol=2e-2, rtol=2e-2)
    assert bool(jnp.all(y1[:, 3] == 0)) and bool(jnp.all(y1[:, 7] == 0))

    # stride 2, pad 1 (downsampling layer)
    y2 = jax.block_until_ready(
        masked_conv2d(x, conv_w, conv_b, conv_mask, (2, 2), (1, 1)))
    r2 = conv_ref(x, conv_w, conv_b, conv_mask, (2, 2), (1, 1))
    assert y2.shape == (N, C_out, 8, 8)
    assert jnp.allclose(y2, r2, atol=2e-2, rtol=2e-2)

    # bf16 MXU inputs, f32 accumulation
    y3 = jax.block_until_ready(
        masked_conv2d(x, conv_w, conv_b, conv_mask, (1, 1), (1, 1),
                      compute_dtype=jnp.bfloat16))
    assert jnp.allclose(y3, r1, atol=1.5e-1, rtol=1.5e-1)

    # --- Conv2d(128 -> 128, 3x3), no bias: large-Cin per-tap path ---
    N2, C2 = 1, 128
    x2 = jax.random.normal(k7, (N2, C2, 8, 8), jnp.float32)
    w2 = 0.05 * jax.random.normal(k8, (C2, C2, 3, 3), jnp.float32)
    m2 = (jax.random.uniform(k9, (C2,)) > 0.25).astype(jnp.float32)
    y4 = jax.block_until_ready(masked_conv2d(x2, w2, None, m2, (1, 1), (1, 1)))
    r4 = conv_ref(x2, w2, jnp.zeros((C2,), jnp.float32), m2, (1, 1), (1, 1))
    assert y4.shape == (N2, C2, 8, 8)
    assert jnp.allclose(y4, r4, atol=5e-2, rtol=5e-2)

    # --- MaskedLayer wrapping Linear(32 -> 16) ---
    B, F_in, F_out = 2, 32, 16
    xl = jax.random.normal(k4, (B, F_in), jnp.float32)
    lin_w = 0.1 * jax.random.normal(k5, (F_out, F_in), jnp.float32)       # PyTorch (out, in)
    lin_b = 0.1 * jax.random.normal(k6, (F_out,), jnp.float32)
    lin_mask = (jnp.arange(F_out) < 10).astype(jnp.float32)
    lin_w_t = jnp.transpose(lin_w)   # pre-transpose ONCE at parameter setup

    y_lin = jax.block_until_ready(masked_linear(xl, lin_w_t, lin_b, lin_mask))
    y_lin_ref = xl @ (lin_w * lin_mask[:, None]).T + lin_b * lin_mask
    assert y_lin.shape == (B, F_out)
    assert jnp.allclose(y_lin, y_lin_ref, atol=2e-2, rtol=2e-2)
    assert bool(jnp.all(y_lin[:, 10:] == 0))

    print("KERNEL_OK")
</pallas_src>

<mosaic_0001>
module attributes {stable_mosaic.version = 11 : i64} {
  func.func @_conv_im2col_kernel(%arg0: i32, %arg1: i32, %arg2: memref<1x18x18x4xf32, #tpu.memory_space<vmem>>, %arg3: memref<36x128xf32, #tpu.memory_space<vmem>>, %arg4: memref<2x128xf32, #tpu.memory_space<vmem>>, %arg5: memref<1x16x16x128xf32, #tpu.memory_space<vmem>>) attributes {dimension_semantics = [#tpu.dimension_semantics<parallel>, #tpu.dimension_semantics<parallel>], iteration_bounds = array<i64: 1, 2>, scalar_prefetch = 0 : i64, scratch_operands = 0 : i64, tpu.core_type = #tpu.core_type<tc>, window_params = [{transform_indices = @transform_0, window_bounds = array<i64: 1, 18, 18, 4>}, {transform_indices = @transform_1, window_bounds = array<i64: 36, 128>}, {transform_indices = @transform_2, window_bounds = array<i64: 2, 128>}, {transform_indices = @transform_3, window_bounds = array<i64: 1, 16, 16, 128>}]} {
    %c0 = arith.constant 0 : index
    %c0_0 = arith.constant 0 : index
    %c0_1 = arith.constant 0 : index
    %c0_2 = arith.constant 0 : index
    %0 = vector.load %arg2[%c0, %c0_0, %c0_1, %c0_2] : memref<1x18x18x4xf32, #tpu.memory_space<vmem>>, vector<1x18x18x4xf32>
    %1 = vector.shape_cast %0 : vector<1x18x18x4xf32> to vector<18x18x4xf32>
    %2 = vector.extract_strided_slice %1 {offsets = [0, 0, 0], sizes = [16, 16, 4], strides = [1, 1, 1]} : vector<18x18x4xf32> to vector<16x16x4xf32>
    %3 = vector.shape_cast %2 : vector<16x16x4xf32> to vector<256x4xf32>
    %4 = vector.extract_strided_slice %1 {offsets = [0, 1, 0], sizes = [16, 16, 4], strides = [1, 1, 1]} : vector<18x18x4xf32> to vector<16x16x4xf32>
    %5 = vector.shape_cast %4 : vector<16x16x4xf32> to vector<256x4xf32>
    %6 = vector.extract_strided_slice %1 {offsets = [0, 2, 0], sizes = [16, 16, 4], strides = [1, 1, 1]} : vector<18x18x4xf32> to vector<16x16x4xf32>
    %7 = vector.shape_cast %6 : vector<16x16x4xf32> to vector<256x4xf32>
    %8 = vector.extract_strided_slice %1 {offsets = [1, 0, 0], sizes = [16, 16, 4], strides = [1, 1, 1]} : vector<18x18x4xf32> to vector<16x16x4xf32>
    %9 = vector.shape_cast %8 : vector<16x16x4xf32> to vector<256x4xf32>
    %10 = vector.extract_strided_slice %1 {offsets = [1, 1, 0], sizes = [16, 16, 4], strides = [1, 1, 1]} : vector<18x18x4xf32> to vector<16x16x4xf32>
    %11 = vector.shape_cast %10 : vector<16x16x4xf32> to vector<256x4xf32>
    %12 = vector.extract_strided_slice %1 {offsets = [1, 2, 0], sizes = [16, 16, 4], strides = [1, 1, 1]} : vector<18x18x4xf32> to vector<16x16x4xf32>
    %13 = vector.shape_cast %12 : vector<16x16x4xf32> to vector<256x4xf32>
    %14 = vector.extract_strided_slice %1 {offsets = [2, 0, 0], sizes = [16, 16, 4], strides = [1, 1, 1]} : vector<18x18x4xf32> to vector<16x16x4xf32>
    %15 = vector.shape_cast %14 : vector<16x16x4xf32> to vector<256x4xf32>
    %16 = vector.extract_strided_slice %1 {offsets = [2, 1, 0], sizes = [16, 16, 4], strides = [1, 1, 1]} : vector<18x18x4xf32> to vector<16x16x4xf32>
    %17 = vector.shape_cast %16 : vector<16x16x4xf32> to vector<256x4xf32>
    %18 = vector.extract_strided_slice %1 {offsets = [2, 2, 0], sizes = [16, 16, 4], strides = [1, 1, 1]} : vector<18x18x4xf32> to vector<16x16x4xf32>
    %19 = vector.shape_cast %18 : vector<16x16x4xf32> to vector<256x4xf32>
    %20 = tpu.concatenate %3, %5, %7, %9, %11, %13, %15, %17, %19 in 1 : vector<256x4xf32>, vector<256x4xf32>, vector<256x4xf32>, vector<256x4xf32>, vector<256x4xf32>, vector<256x4xf32>, vector<256x4xf32>, vector<256x4xf32>, vector<256x4xf32> -> vector<256x36xf32>
    %c0_3 = arith.constant 0 : index
    %c0_4 = arith.constant 0 : index
    %21 = vector.load %arg3[%c0_3, %c0_4] : memref<36x128xf32, #tpu.memory_space<vmem>>, vector<36x128xf32>
    %cst = arith.constant dense<0.000000e+00> : vector<256x128xf32>
    %22 = tpu.matmul %20, %21, %cst {dimension_numbers = #tpu.dot_dimension_numbers<[1], [0], [0], [1], [0, 0, 1, 1], [], []>} : vector<256x36xf32>, vector<36x128xf32>, vector<256x128xf32> -> vector<256x128xf32>
    %c0_5 = arith.constant 0 : index
    %c0_6 = arith.constant 0 : index
    %23 = vector.load %arg4[%c0_5, %c0_6] : memref<2x128xf32, #tpu.memory_space<vmem>>, vector<1x128xf32>
    %24 = vector.broadcast %23 : vector<1x128xf32> to vector<256x128xf32>
    %25 = arith.mulf %22, %24 : vector<256x128xf32>
    %c1 = arith.constant 1 : index
    %c0_7 = arith.constant 0 : index
    %26 = vector.load %arg4[%c1, %c0_7] : memref<2x128xf32, #tpu.memory_space<vmem>>, vector<1x128xf32>
    %27 = vector.broadcast %26 : vector<1x128xf32> to vector<256x128xf32>
    %28 = arith.addf %25, %27 : vector<256x128xf32>
    %29 = vector.shape_cast %28 : vector<256x128xf32> to vector<16x16x128xf32>
    %c0_8 = arith.constant 0 : index
    %c0_9 = arith.constant 0 : index
    %c0_10 = arith.constant 0 : index
    %c0_11 = arith.constant 0 : index
    %30 = vector.load %arg5[%c0_8, %c0_9, %c0_10, %c0_11] : memref<1x16x16x128xf32, #tpu.memory_space<vmem>>, vector<1x16x16x128xf32>
    %31 = vector.shape_cast %30 : vector<1x16x16x128xf32> to vector<16x16x128xf32>
    %32 = vector.shape_cast %29 : vector<16x16x128xf32> to vector<1x16x16x128xf32>
    tpu.vector_store %arg5[%c0_8, %c0_9, %c0_10, %c0_11], %32 {strides = array<i32>} : memref<1x16x16x128xf32, #tpu.memory_space<vmem>>, vector<1x16x16x128xf32>,
    return
  }
  func.func @transform_0(%arg0: i32, %arg1: i32) -> (i32, i32, i32, i32) {
    %c0_i32 = arith.constant 0 : i32
    %c0_i32_0 = arith.constant 0 : i32
    %c0_i32_1 = arith.constant 0 : i32
    %c0_i32_2 = arith.constant 0 : i32
    return %arg1, %c0_i32, %c0_i32_0, %c0_i32_1 : i32, i32, i32, i32
  }
  func.func @transform_1(%arg0: i32, %arg1: i32) -> (i32, i32) {
    %c0_i32 = arith.constant 0 : i32
    %c0_i32_0 = arith.constant 0 : i32
    return %c0_i32, %arg0 : i32, i32
  }
  func.func @transform_2(%arg0: i32, %arg1: i32) -> (i32, i32) {
    %c0_i32 = arith.constant 0 : i32
    %c0_i32_0 = arith.constant 0 : i32
    return %c0_i32, %arg0 : i32, i32
  }
  func.func @transform_3(%arg0: i32, %arg1: i32) -> (i32, i32, i32, i32) {
    %c0_i32 = arith.constant 0 : i32
    %c0_i32_0 = arith.constant 0 : i32
    %c0_i32_1 = arith.constant 0 : i32
    return %arg1, %c0_i32, %c0_i32_0, %arg0 : i32, i32, i32, i32
  }
}

</mosaic_0001>

<llo_original>
// kernel: tpu_custom_call.1
$region0: #{tpu_custom_call.1}
  #allocation0 [shape = 'u32[]', space=smem, size = 0x4, offset = 0x4, fixed_abs, tag = 'smem constant byte address 0x4 - core index']
  #allocation1 [shape = 'u32[144,128]{1,0:T(1,128)}', space=vmem, size = 0x12000, scoped, tag = 'internal scratch']
  %s0 = inlined_call_operand.hbm [shape: f32[2,18,18,4], index: 0, kind: input, shape index: {}]
  %s1 = inlined_call_operand.hbm [shape: f32[36,128], index: 1, kind: input, shape index: {}]
  %s2 = inlined_call_operand.hbm [shape: f32[2,128], index: 2, kind: input, shape index: {}]
  %s3 = inlined_call_operand.hbm [shape: f32[2,16,16,128], index: 3, kind: output, shape index: {}]
  %s4 = sld [smem:[#allocation0]]
  $region57: #{tpu_custom_call.1} parent=0
    _
  %s6 = ssub.s32 1, %s4
  %s7 = scalar_select 0, %s6, %s4
  $region1: #{tpu_custom_call.1} parent=0
    #allocation2 [shape = 'u8[442368]{0}', space=vmem, size = 0x6c000, scoped, tag = 'input window, operand 0']
    #allocation3 [shape = 's32[2]{0}', space=sflag, size = 0x8, scoped, tag = 'scoped memory for tpu_custom_call.1']
    #allocation4 [shape = 's32[2]{0}', space=sflag, size = 0x8, scoped, tag = 'scoped memory for tpu_custom_call.1']
    #allocation5 [shape = 'u8[20480]{0}', space=vmem, size = 0x5000, scoped, tag = 'input window, operand 1, single buffered']
    #allocation6 [shape = 's32[1]{0}', space=sflag, size = 0x4, scoped, tag = 'scoped memory for tpu_custom_call.1']
    #allocation7 [shape = 'u8[1024]{0}', space=vmem, size = 0x400, scoped, tag = 'input window, operand 2, single buffered']
    #allocation8 [shape = 'u8[262144]{0}', space=vmem, size = 0x40000, scoped, tag = 'output window, operand 0']
    %8 = vsyncpa [#allocation3], 0
    %s9 = scalar_lea.sflag [#allocation3], 1
    %10 = vsyncpa %s9, 0
    %11 = vsyncpa [#allocation6], 0
    %12 = vsyncpa [#allocation4], 0
    %s13 = scalar_lea.sflag [#allocation4], 1
    %14 = vsyncpa %s13, 0
    loop: start=0, step=1, limit=4
    $region2: #{tpu_custom_call.1} parent=1 // loop_pre_header
      _
    $region3: #{tpu_custom_call.1} parent=1 // loop_header
      %s16 = sphi 0, %s20
      %p17 = scmp.ge.s32.totalorder %s16, 4
      %s23 = sphi 0, %s35
      %s24 = sphi 0, %s31
      %s25 = sphi 0, %s23
      %s26 = sphi 0, %s24
      %s27 = sphi 0, %s25
      %s28 = sphi 0, %s26
      %s38 = sphi 0, %s40
      %s41 = sphi 0, %s38
      %s42 = sphi 0, %s41
      %s58 = sphi 0, %s42
      %s64 = sphi 0, %s66
      %s67 = sphi 0, %s64
      %s68 = sphi 0, %s67
      %s84 = sphi 0, %s68
      %s90 = sphi 0, %s92
      %s93 = sphi 0, %s90
      %s94 = sphi 0, %s93
      %s110 = sphi 0, %s94
      %s118 = sphi 0, %s120
      %s121 = sphi 0, %s118
      %s122 = sphi 0, %s121
      %s138 = sphi 0, %s122
    $region4: #{tpu_custom_call.1} parent=1 // loop_header_branch
      %19 = sbr.rel (%p17) target = $region8
    $region5: #{tpu_custom_call.1} parent=1 // loop_body
      %s21 = ssub.s32 %s16, 1
      %s22 = ssub.s32 %s16, 2
      %s29 = sadd.s32 1, %s24
      %p30 = scmp.ge.s32.totalorder %s29, 2
      %s31 = scalar_select %p30, 0, %s29
      %s32 = sadd.s32 1, %s23
      %s33 = scalar_select %p30, %s32, %s23
      %p34 = scmp.ge.s32.totalorder %s33, 1
      %s35 = scalar_select %p34, 0, %s33
      %s36 = ssub.s32 %s24, %s31
      %p37 = scmp.eq.s32.totalorder %s36, 0
      %s39 = sadd.s32 %s38, 1
      %s40 = scalar_select %p37, %s38, %s39
      %p43 = pneg %p37
      %p44 = scmp.eq.s32.totalorder %s16, 1
      %p45 = por %p43, %p44
      %p46 = scmp.ne.s32.totalorder %s38, %s41
      %p47 = scmp.eq.s32.totalorder %s16, 0
      %p48 = por %p46, %p47
      %p49 = scmp.ne.s32.totalorder %s38, %s41
      %p50 = scmp.eq.s32.totalorder %s21, 1
      %p51 = por %p49, %p50
      %p52 = scmp.ne.s32.totalorder %s41, %s42
      %p53 = scmp.eq.s32.totalorder %s21, 0
      %p54 = por %p52, %p53
      %p55 = scmp.ne.s32.totalorder %s41, %s42
      %p56 = scmp.eq.s32.totalorder %s22, 1
      %p57 = por %p55, %p56
      %p59 = scmp.ne.s32.totalorder %s42, %s58
      %p60 = scmp.eq.s32.totalorder %s22, 0
      %p61 = por %p59, %p60
      %s62 = ssub.s32 %s23, %s35
      %p63 = scmp.eq.s32.totalorder %s62, 0
      %s65 = sadd.s32 %s64, 1
      %s66 = scalar_select %p63, %s64, %s65
      %p69 = pneg %p63
      %p70 = scmp.eq.s32.totalorder %s16, 1
      %p71 = por %p69, %p70
      %p72 = scmp.ne.s32.totalorder %s64, %s67
      %p73 = scmp.eq.s32.totalorder %s16, 0
      %p74 = por %p72, %p73
      %p75 = scmp.ne.s32.totalorder %s64, %s67
      %p76 = scmp.eq.s32.totalorder %s21, 1
      %p77 = por %p75, %p76
      %p78 = scmp.ne.s32.totalorder %s67, %s68
      %p79 = scmp.eq.s32.totalorder %s21, 0
      %p80 = por %p78, %p79
      %p81 = scmp.ne.s32.totalorder %s67, %s68
      %p82 = scmp.eq.s32.totalorder %s22, 1
      %p83 = por %p81, %p82
      %p85 = scmp.ne.s32.totalorder %s68, %s84
      %p86 = scmp.eq.s32.totalorder %s22, 0
      %p87 = por %p85, %p86
      %s88 = ssub.s32 %s23, %s35
      %p89 = scmp.eq.s32.totalorder %s88, 0
      %s91 = sadd.s32 %s90, 1
      %s92 = scalar_select %p89, %s90, %s91
      %p95 = pneg %p89
      %p96 = scmp.eq.s32.totalorder %s16, 1
      %p97 = por %p95, %p96
      %p98 = scmp.ne.s32.totalorder %s90, %s93
      %p99 = scmp.eq.s32.totalorder %s16, 0
      %p100 = por %p98, %p99
      %p101 = scmp.ne.s32.totalorder %s90, %s93
      %p102 = scmp.eq.s32.totalorder %s21, 1
      %p103 = por %p101, %p102
      %p104 = scmp.ne.s32.totalorder %s93, %s94
      %p105 = scmp.eq.s32.totalorder %s21, 0
      %p106 = por %p104, %p105
      %p107 = scmp.ne.s32.totalorder %s93, %s94
      %p108 = scmp.eq.s32.totalorder %s22, 1
      %p109 = por %p107, %p108
      %p111 = scmp.ne.s32.totalorder %s94, %s110
      %p112 = scmp.eq.s32.totalorder %s22, 0
      %p113 = por %p111, %p112
      %s114 = ssub.s32 %s24, %s31
      %s115 = ssub.s32 %s23, %s35
      %s116 = sor.u32 %s114, %s115
      %p117 = scmp.eq.s32.totalorder %s116, 0
      %s119 = sadd.s32 %s118, 1
      %s120 = scalar_select %p117, %s118, %s119
      %p123 = pneg %p117
      %p124 = scmp.eq.s32.totalorder %s16, 1
      %p125 = por %p123, %p124
      %p126 = scmp.ne.s32.totalorder %s118, %s121
      %p127 = scmp.eq.s32.totalorder %s16, 0
      %p128 = por %p126, %p127
      %p129 = scmp.ne.s32.totalorder %s118, %s121
      %p130 = scmp.eq.s32.totalorder %s21, 1
      %p131 = por %p129, %p130
      %p132 = scmp.ne.s32.totalorder %s121, %s122
      %p133 = scmp.eq.s32.totalorder %s21, 0
      %p134 = por %p132, %p133
      %p135 = scmp.ne.s32.totalorder %s121, %s122
      %p136 = scmp.eq.s32.totalorder %s22, 1
      %p137 = por %p135, %p136
      %p139 = scmp.ne.s32.totalorder %s122, %s138
      %p140 = scmp.eq.s32.totalorder %s22, 0
      %p141 = por %p139, %p140
      %p142 = scmp.le.s32.totalorder 1, %s16
      %p143 = scmp.lt.s32.totalorder %s16, 3
      %p144 = pnand %p142, %p143
      %p145 = pneg %p144
      // Predicated region
      $region9: #{tpu_custom_call.1} parent=5 // pred_check
        _
      $region10: #{tpu_custom_call.1} parent=5 // pred_check_branch
        %147 = sbr.rel (%p144) target = $region12
      $region11: #{tpu_custom_call.1} parent=5 // pred_region
        %s148 = ssub.s32 %s16, 1
        // Predicated region
        $region13: #{tpu_custom_call.1} parent=11 // pred_check
          %p149 = pneg %p80
        $region14: #{tpu_custom_call.1} parent=11 // pred_check_branch
          %151 = sbr.rel (%p149) target = $region16
        $region15: #{tpu_custom_call.1} parent=11 // pred_region
          %s153 = ssub.s32 640, 640
          %154 = vsyncadd [#allocation6], %s153
          %s155 = smul.addr %s25, 128
          %s156 = scalar_lea.hbm %s1, %s155
          %s157 = sshll.u32 [#allocation5], 4
          %s158 = int_to_ptr.vmem [resolvable:$true] %s157
          %163 = dma.hbm_to_vmem [thread:$0]  %s156, 640, %s158, [#allocation6], 128, 128, 8
        $region16: #{tpu_custom_call.1} parent=11 // pred_fallthru
          _
        // Predicated region
        $region17: #{tpu_custom_call.1} parent=11 // pred_check
          %p164 = pneg %p106
        $region18: #{tpu_custom_call.1} parent=11 // pred_check_branch
          %166 = sbr.rel (%p164) target = $region20
        $region19: #{tpu_custom_call.1} parent=11 // pred_region
          %s168 = ssub.s32 32, 32
          %169 = vsyncadd [#allocation6], %s168
          %s170 = smul.addr %s25, 32
          %s171 = scalar_lea.hbm %s2, %s170
          %s173 = sshll.u32 [#allocation7], 4
          %s174 = int_to_ptr.vmem [resolvable:$true] %s173
          %176 = dma.hbm_to_vmem [thread:$0]  %s171, 32, %s174, [#allocation6]
        $region20: #{tpu_custom_call.1} parent=11 // pred_fallthru
          _
      $region12: #{tpu_custom_call.1} parent=5 // pred_fallthru
        _
      %p177 = scmp.lt.s32.totalorder %s16, 2
      // Predicated region
      $region21: #{tpu_custom_call.1} parent=5 // pred_check
        %p178 = pneg %p177
      $region22: #{tpu_custom_call.1} parent=5 // pred_check_branch
        %180 = sbr.rel (%p178) target = $region24
      $region23: #{tpu_custom_call.1} parent=5 // pred_region
        // Predicated region
        $region25: #{tpu_custom_call.1} parent=23 // pred_check
          %p181 = pneg %p48
        $region26: #{tpu_custom_call.1} parent=23 // pred_check_branch
          %183 = sbr.rel (%p181) target = $region28
        $region27: #{tpu_custom_call.1} parent=23 // pred_region
          %s184 = sand.u32 %s38, 1
          %s185 = scalar_lea.sflag [#allocation3], %s184
          %s186 = sand.u32 %s38, 1
          %s187 = smul.addr %s186, 432
          %s188 = scalar_lea.vmem [#allocation2], %s187
          %s190 = ssub.s32 6912, 6912
          %191 = vsyncadd %s185, %s190
          %s192 = smul.addr %s24, 54
          %s193 = smul.addr %s192, 128
          %s194 = scalar_lea.hbm %s0, %s193
          %s195 = sshll.u32 %s188, 4
          %s196 = int_to_ptr.vmem [resolvable:$true] %s195
          %201 = dma.hbm_to_vmem [thread:$0]  %s194, 6912, %s196, %s185, 128, 128, 8
        $region28: #{tpu_custom_call.1} parent=23 // pred_fallthru
          _
      $region24: #{tpu_custom_call.1} parent=5 // pred_fallthru
        _
      %p202 = scmp.le.s32.totalorder 1, %s16
      %p203 = scmp.lt.s32.totalorder %s16, 3
      %p204 = pnand %p202, %p203
      %p205 = pneg %p204
      // Predicated region
      $region29: #{tpu_custom_call.1} parent=5 // pred_check
        _
      $region30: #{tpu_custom_call.1} parent=5 // pred_check_branch
        %207 = sbr.rel (%p204) target = $region32
      $region31: #{tpu_custom_call.1} parent=5 // pred_region
        %s208 = ssub.s32 %s16, 1
        %s209 = sand.u32 %s41, 1
        %s210 = scalar_lea.sflag [#allocation3], %s209
        %s211 = sand.u32 %s41, 1
        %s212 = smul.addr %s211, 432
        %s213 = scalar_lea.vmem [#allocation2], %s212
        // Predicated region
        $region33: #{tpu_custom_call.1} parent=31 // pred_check
          %p214 = pneg %p54
        $region34: #{tpu_custom_call.1} parent=31 // pred_check_branch
          %216 = sbr.rel (%p214) target = $region36
        $region35: #{tpu_custom_call.1} parent=31 // pred_region
          %217 = dma.done %s210, 6912
        $region36: #{tpu_custom_call.1} parent=31 // pred_fallthru
          _
        // Predicated region
        $region37: #{tpu_custom_call.1} parent=31 // pred_check
          %p218 = pneg %p80
        $region38: #{tpu_custom_call.1} parent=31 // pred_check_branch
          %220 = sbr.rel (%p218) target = $region40
        $region39: #{tpu_custom_call.1} parent=31 // pred_region
          %221 = dma.done [#allocation6], 640
        $region40: #{tpu_custom_call.1} parent=31 // pred_fallthru
          _
        // Predicated region
        $region41: #{tpu_custom_call.1} parent=31 // pred_check
          %p222 = pneg %p106
        $region42: #{tpu_custom_call.1} parent=31 // pred_check_branch
          %224 = sbr.rel (%p222) target = $region44
        $region43: #{tpu_custom_call.1} parent=31 // pred_region
          %225 = dma.done [#allocation6], 32
        $region44: #{tpu_custom_call.1} parent=31 // pred_fallthru
          _
        %s226 = sand.u32 %s41, 1
        %s227 = scalar_lea.sflag [#allocation3], %s226
        %s228 = sand.u32 %s41, 1
        %s229 = smul.addr %s228, 432
        %s230 = scalar_lea.vmem [#allocation2], %s229
        %p231 = pneg %p54
        %p232 = pneg %p51
        %p233 = pneg %p80
        %p234 = pneg %p77
        %p235 = pneg %p106
        %p236 = pneg %p103
        %p237 = pneg %p134
        %p238 = pneg %p131
        %s239 = sand.u32 %s121, 1
        %s240 = scalar_lea.sflag [#allocation4], %s239
        %s241 = sand.u32 %s121, 1
        %s242 = smul.addr %s241, 256
        %s243 = scalar_lea.vmem [#allocation8], %s242
        %v244 = vld [vmem:[%s213] sm:$0xff]
        %v245 = vld [vmem:[%s213 + $0x8] sm:$0xff]
        %v246 = vld [vmem:[%s213 + $0x10] sm:$0x3]
        %v247 = vld [vmem:[%s213 + $0x18] sm:$0xff]
        %v248 = vld [vmem:[%s213 + $0x20] sm:$0xff]
        %v249 = vld [vmem:[%s213 + $0x28] sm:$0x3]
        %v250 = vld [vmem:[%s213 + $0x30] sm:$0xff]
        %v251 = vld [vmem:[%s213 + $0x38] sm:$0xff]
        %v252 = vld [vmem:[%s213 + $0x40] sm:$0x3]
        %v253 = vld [vmem:[%s213 + $0x48] sm:$0xff]
        %v254 = vld [vmem:[%s213 + $0x50] sm:$0xff]
        %v255 = vld [vmem:[%s213 + $0x58] sm:$0x3]
        %v256 = vld [vmem:[%s213 + $0x60] sm:$0xff]
        %v257 = vld [vmem:[%s213 + $0x68] sm:$0xff]
        %v258 = vld [vmem:[%s213 + $0x70] sm:$0x3]
        %v259 = vld [vmem:[%s213 + $0x78] sm:$0xff]
        %v260 = vld [vmem:[%s213 + $0x80] sm:$0xff]
        %v261 = vld [vmem:[%s213 + $0x88] sm:$0x3]
        %v262 = vld [vmem:[%s213 + $0x90] sm:$0xff]
        %v263 = vld [vmem:[%s213 + $0x98] sm:$0xff]
        %v264 = vld [vmem:[%s213 + $0xa0] sm:$0x3]
        %v265 = vld [vmem:[%s213 + $0xa8] sm:$0xff]
        %v266 = vld [vmem:[%s213 + $0xb0] sm:$0xff]
        %v267 = vld [vmem:[%s213 + $0xb8] sm:$0x3]
        %v268 = vld [vmem:[%s213 + $0xc0] sm:$0xff]
        %v269 = vld [vmem:[%s213 + $0xc8] sm:$0xff]
        %v270 = vld [vmem:[%s213 + $0xd0] sm:$0x3]
        %v271 = vld [vmem:[%s213 + $0xd8] sm:$0xff]
        %v272 = vld [vmem:[%s213 + $0xe0] sm:$0xff]
        %v273 = vld [vmem:[%s213 + $0xe8] sm:$0x3]
        %v274 = vld [vmem:[%s213 + $0xf0] sm:$0xff]
        %v275 = vld [vmem:[%s213 + $0xf8] sm:$0xff]
        %v276 = vld [vmem:[%s213 + $0x100] sm:$0x3]
        %v277 = vld [vmem:[%s213 + $0x108] sm:$0xff]
        %v278 = vld [vmem:[%s213 + $0x110] sm:$0xff]
        %v279 = vld [vmem:[%s213 + $0x118] sm:$0x3]
        %v280 = vld [vmem:[%s213 + $0x120] sm:$0xff]
        %v281 = vld [vmem:[%s213 + $0x128] sm:$0xff]
        %v282 = vld [vmem:[%s213 + $0x130] sm:$0x3]
        %v283 = vld [vmem:[%s213 + $0x138] sm:$0xff]
        %v284 = vld [vmem:[%s213 + $0x140] sm:$0xff]
        %v285 = vld [vmem:[%s213 + $0x148] sm:$0x3]
        %v286 = vld [vmem:[%s213 + $0x150] sm:$0xff]
        %v287 = vld [vmem:[%s213 + $0x158] sm:$0xff]
        %v288 = vld [vmem:[%s213 + $0x160] sm:$0x3]
        %v289 = vld [vmem:[%s213 + $0x168] sm:$0xff]
        %v290 = vld [vmem:[%s213 + $0x170] sm:$0xff]
        %v291 = vld [vmem:[%s213 + $0x178] sm:$0x3]
        %v292 = vld [vmem:[%s213 + $0x180] sm:$0xff]
        %v293 = vld [vmem:[%s213 + $0x188] sm:$0xff]
        %v294 = vld [vmem:[%s213 + $0x190] sm:$0x3]
        %v295 = vld [vmem:[%s213 + $0x198] sm:$0xff]
        %v296 = vld [vmem:[%s213 + $0x1a0] sm:$0xff]
        %v297 = vld [vmem:[%s213 + $0x1a8] sm:$0x3]
        %vm346 = vcmask 1046528
        %v347 = vrot.slane %v244, 1
        %v348 = vrot.slane %v245, 1
        %v349 = vsel %vm346, %v347, %v348
        %v350 = vrot.slane %v246, 1
        %v351 = vsel %vm346, %v348, %v350
        %v352 = vrot.slane %v247, 1
        %v353 = vrot.slane %v248, 1
        %v354 = vsel %vm346, %v352, %v353
        %v355 = vrot.slane %v249, 1
        %v356 = vsel %vm346, %v353, %v355
        %v357 = vrot.slane %v250, 1
        %v358 = vrot.slane %v251, 1
        %v359 = vsel %vm346, %v357, %v358
        %v360 = vrot.slane %v252, 1
        %v361 = vsel %vm346, %v358, %v360
        %v362 = vrot.slane %v253, 1
        %v363 = vrot.slane %v254, 1
        %v364 = vsel %vm346, %v362, %v363
        %v365 = vrot.slane %v255, 1
        %v366 = vsel %vm346, %v363, %v365
        %v367 = vrot.slane %v256, 1
        %v368 = vrot.slane %v257, 1
        %v369 = vsel %vm346, %v367, %v368
        %v370 = vrot.slane %v258, 1
        %v371 = vsel %vm346, %v368, %v370
        %v372 = vrot.slane %v259, 1
        %v373 = vrot.slane %v260, 1
        %v374 = vsel %vm346, %v372, %v373
        %v375 = vrot.slane %v261, 1
        %v376 = vsel %vm346, %v373, %v375
        %v377 = vrot.slane %v262, 1
        %v378 = vrot.slane %v263, 1
        %v379 = vsel %vm346, %v377, %v378
        %v380 = vrot.slane %v264, 1
        %v381 = vsel %vm346, %v378, %v380
        %v382 = vrot.slane %v265, 1
        %v383 = vrot.slane %v266, 1
        %v384 = vsel %vm346, %v382, %v383
        %v385 = vrot.slane %v267, 1
        %v386 = vsel %vm346, %v383, %v385
        %v387 = vrot.slane %v268, 1
        %v388 = vrot.slane %v269, 1
        %v389 = vsel %vm346, %v387, %v388
        %v390 = vrot.slane %v270, 1
        %v391 = vsel %vm346, %v388, %v390
        %v392 = vrot.slane %v271, 1
        %v393 = vrot.slane %v272, 1
        %v394 = vsel %vm346, %v392, %v393
        %v395 = vrot.slane %v273, 1
        %v396 = vsel %vm346, %v393, %v395
        %v397 = vrot.slane %v274, 1
        %v398 = vrot.slane %v275, 1
        %v399 = vsel %vm346, %v397, %v398
        %v400 = vrot.slane %v276, 1
        %v401 = vsel %vm346, %v398, %v400
        %v402 = vrot.slane %v277, 1
        %v403 = vrot.slane %v278, 1
        %v404 = vsel %vm346, %v402, %v403
        %v405 = vrot.slane %v279, 1
        %v406 = vsel %vm346, %v403, %v405
        %v407 = vrot.slane %v280, 1
        %v408 = vrot.slane %v281, 1
        %v409 = vsel %vm346, %v407, %v408
        %v410 = vrot.slane %v282, 1
        %v411 = vsel %vm346, %v408, %v410
        %v412 = vrot.slane %v283, 1
        %v413 = vrot.slane %v284, 1
        %v414 = vsel %vm346, %v412, %v413
        %v415 = vrot.slane %v285, 1
        %v416 = vsel %vm346, %v413, %v415
        %v417 = vrot.slane %v286, 1
        %v418 = vrot.slane %v287, 1
        %v419 = vsel %vm346, %v417, %v418
        %v420 = vrot.slane %v288, 1
        %v421 = vsel %vm346, %v418, %v420
        %v422 = vrot.slane %v289, 1
        %v423 = vrot.slane %v290, 1
        %v424 = vsel %vm346, %v422, %v423
        %v425 = vrot.slane %v291, 1
        %v426 = vsel %vm346, %v423, %v425
        %vm427 = vcmask 1045504
        %v428 = vrot.slane %v244, 2
        %v429 = vrot.slane %v245, 2
        %v430 = vsel %vm427, %v428, %v429
        %v431 = vrot.slane %v246, 2
        %v432 = vsel %vm427, %v429, %v431
        %v433 = vrot.slane %v247, 2
        %v434 = vrot.slane %v248, 2
        %v435 = vsel %vm427, %v433, %v434
        %v436 = vrot.slane %v249, 2
        %v437 = vsel %vm427, %v434, %v436
        %v438 = vrot.slane %v250, 2
        %v439 = vrot.slane %v251, 2
        %v440 = vsel %vm427, %v438, %v439
        %v441 = vrot.slane %v252, 2
        %v442 = vsel %vm427, %v439, %v441
        %v443 = vrot.slane %v253, 2
        %v444 = vrot.slane %v254, 2
        %v445 = vsel %vm427, %v443, %v444
        %v446 = vrot.slane %v255, 2
        %v447 = vsel %vm427, %v444, %v446
        %v448 = vrot.slane %v256, 2
        %v449 = vrot.slane %v257, 2
        %v450 = vsel %vm427, %v448, %v449
        %v451 = vrot.slane %v258, 2
        %v452 = vsel %vm427, %v449, %v451
        %v453 = vrot.slane %v259, 2
        %v454 = vrot.slane %v260, 2
        %v455 = vsel %vm427, %v453, %v454
        %v456 = vrot.slane %v261, 2
        %v457 = vsel %vm427, %v454, %v456
        %v458 = vrot.slane %v262, 2
        %v459 = vrot.slane %v263, 2
        %v460 = vsel %vm427, %v458, %v459
        %v461 = vrot.slane %v264, 2
        %v462 = vsel %vm427, %v459, %v461
        %v463 = vrot.slane %v265, 2
        %v464 = vrot.slane %v266, 2
        %v465 = vsel %vm427, %v463, %v464
        %v466 = vrot.slane %v267, 2
        %v467 = vsel %vm427, %v464, %v466
        %v468 = vrot.slane %v268, 2
        %v469 = vrot.slane %v269, 2
        %v470 = vsel %vm427, %v468, %v469
        %v471 = vrot.slane %v270, 2
        %v472 = vsel %vm427, %v469, %v471
        %v473 = vrot.slane %v271, 2
        %v474 = vrot.slane %v272, 2
        %v475 = vsel %vm427, %v473, %v474
        %v476 = vrot.slane %v273, 2
        %v477 = vsel %vm427, %v474, %v476
        %v478 = vrot.slane %v274, 2
        %v479 = vrot.slane %v275, 2
        %v480 = vsel %vm427, %v478, %v479
        %v481 = vrot.slane %v276, 2
        %v482 = vsel %vm427, %v479, %v481
        %v483 = vrot.slane %v277, 2
        %v484 = vrot.slane %v278, 2
        %v485 = vsel %vm427, %v483, %v484
        %v486 = vrot.slane %v279, 2
        %v487 = vsel %vm427, %v484, %v486
        %v488 = vrot.slane %v280, 2
        %v489 = vrot.slane %v281, 2
        %v490 = vsel %vm427, %v488, %v489
        %v491 = vrot.slane %v282, 2
        %v492 = vsel %vm427, %v489, %v491
        %v493 = vrot.slane %v283, 2
        %v494 = vrot.slane %v284, 2
        %v495 = vsel %vm427, %v493, %v494
        %v496 = vrot.slane %v285, 2
        %v497 = vsel %vm427, %v494, %v496
        %v498 = vrot.slane %v286, 2
        %v499 = vrot.slane %v287, 2
        %v500 = vsel %vm427, %v498, %v499
        %v501 = vrot.slane %v288, 2
        %v502 = vsel %vm427, %v499, %v501
        %v503 = vrot.slane %v289, 2
        %v504 = vrot.slane %v290, 2
        %v505 = vsel %vm427, %v503, %v504
        %v506 = vrot.slane %v291, 2
        %v507 = vsel %vm427, %v504, %v506
        %v511 = vrot.slane %v292, 1
        %v512 = vrot.slane %v293, 1
        %v513 = vsel %vm346, %v511, %v512
        %v514 = vrot.slane %v294, 1
        %v515 = vsel %vm346, %v512, %v514
        %v516 = vrot.slane %v292, 2
        %v517 = vrot.slane %v293, 2
        %v518 = vsel %vm427, %v516, %v517
        %v519 = vrot.slane %v294, 2
        %v520 = vsel %vm427, %v517, %v519
        %v524 = vrot.slane %v295, 1
        %v525 = vrot.slane %v296, 1
        %v526 = vsel %vm346, %v524, %v525
        %v527 = vrot.slane %v297, 1
        %v528 = vsel %vm346, %v525, %v527
        %v529 = vrot.slane %v295, 2
        %v530 = vrot.slane %v296, 2
        %v531 = vsel %vm427, %v529, %v530
        %v532 = vrot.slane %v297, 2
        %v533 = vsel %vm427, %v530, %v532
        %534 = vrot.lane.b32.xlu0 %v349, 4
        %v535 = vpop.permute.xlu0 %534
        %536 = vrot.lane.b32.xlu0 %v351, 4
        %v537 = vpop.permute.xlu0 %536
        %538 = vrot.lane.b32.xlu0 %v354, 4
        %v539 = vpop.permute.xlu0 %538
        %540 = vrot.lane.b32.xlu0 %v356, 4
        %v541 = vpop.permute.xlu0 %540
        %542 = vrot.lane.b32.xlu0 %v359, 4
        %v543 = vpop.permute.xlu0 %542
        %544 = vrot.lane.b32.xlu0 %v361, 4
        %v545 = vpop.permute.xlu0 %544
        %546 = vrot.lane.b32.xlu0 %v364, 4
        %v547 = vpop.permute.xlu0 %546
        %548 = vrot.lane.b32.xlu0 %v366, 4
        %v549 = vpop.permute.xlu0 %548
        %550 = vrot.lane.b32.xlu0 %v369, 4
        %v551 = vpop.permute.xlu0 %550
        %552 = vrot.lane.b32.xlu0 %v371, 4
        %v553 = vpop.permute.xlu0 %552
        %554 = vrot.lane.b32.xlu0 %v374, 4
        %v555 = vpop.permute.xlu0 %554
        %556 = vrot.lane.b32.xlu0 %v376, 4
        %v557 = vpop.permute.xlu0 %556
        %558 = vrot.lane.b32.xlu0 %v379, 4
        %v559 = vpop.permute.xlu0 %558
        %560 = vrot.lane.b32.xlu0 %v381, 4
        %v561 = vpop.permute.xlu0 %560
        %562 = vrot.lane.b32.xlu0 %v384, 4
        %v563 = vpop.permute.xlu0 %562
        %564 = vrot.lane.b32.xlu0 %v386, 4
        %v565 = vpop.permute.xlu0 %564
        %566 = vrot.lane.b32.xlu0 %v389, 4
        %v567 = vpop.permute.xlu0 %566
        %568 = vrot.lane.b32.xlu0 %v391, 4
        %v569 = vpop.permute.xlu0 %568
        %570 = vrot.lane.b32.xlu0 %v394, 4
        %v571 = vpop.permute.xlu0 %570
        %572 = vrot.lane.b32.xlu0 %v396, 4
        %v573 = vpop.permute.xlu0 %572
        %574 = vrot.lane.b32.xlu0 %v399, 4
        %v575 = vpop.permute.xlu0 %574
        %576 = vrot.lane.b32.xlu0 %v401, 4
        %v577 = vpop.permute.xlu0 %576
        %578 = vrot.lane.b32.xlu0 %v404, 4
        %v579 = vpop.permute.xlu0 %578
        %580 = vrot.lane.b32.xlu0 %v406, 4
        %v581 = vpop.permute.xlu0 %580
        %582 = vrot.lane.b32.xlu0 %v409, 4
        %v583 = vpop.permute.xlu0 %582
        %584 = vrot.lane.b32.xlu0 %v411, 4
        %v585 = vpop.permute.xlu0 %584
        %586 = vrot.lane.b32.xlu0 %v414, 4
        %v587 = vpop.permute.xlu0 %586
        %588 = vrot.lane.b32.xlu0 %v416, 4
        %v589 = vpop.permute.xlu0 %588
        %590 = vrot.lane.b32.xlu0 %v419, 4
        %v591 = vpop.permute.xlu0 %590
        %592 = vrot.lane.b32.xlu0 %v421, 4
        %v593 = vpop.permute.xlu0 %592
        %594 = vrot.lane.b32.xlu0 %v424, 4
        %v595 = vpop.permute.xlu0 %594
        %596 = vrot.lane.b32.xlu0 %v426, 4
        %v597 = vpop.permute.xlu0 %596
        %630 = vrot.lane.b32.xlu0 %v430, 8
        %v631 = vpop.permute.xlu0 %630
        %632 = vrot.lane.b32.xlu0 %v432, 8
        %v633 = vpop.permute.xlu0 %632
        %634 = vrot.lane.b32.xlu0 %v435, 8
        %v635 = vpop.permute.xlu0 %634
        %636 = vrot.lane.b32.xlu0 %v437, 8
        %v637 = vpop.permute.xlu0 %636
        %638 = vrot.lane.b32.xlu0 %v440, 8
        %v639 = vpop.permute.xlu0 %638
        %640 = vrot.lane.b32.xlu0 %v442, 8
        %v641 = vpop.permute.xlu0 %640
        %642 = vrot.lane.b32.xlu0 %v445, 8
        %v643 = vpop.permute.xlu0 %642
        %644 = vrot.lane.b32.xlu0 %v447, 8
        %v645 = vpop.permute.xlu0 %644
        %646 = vrot.lane.b32.xlu0 %v450, 8
        %v647 = vpop.permute.xlu0 %646
        %648 = vrot.lane.b32.xlu0 %v452, 8
        %v649 = vpop.permute.xlu0 %648
        %650 = vrot.lane.b32.xlu0 %v455, 8
        %v651 = vpop.permute.xlu0 %650
        %652 = vrot.lane.b32.xlu0 %v457, 8
        %v653 = vpop.permute.xlu0 %652
        %654 = vrot.lane.b32.xlu0 %v460, 8
        %v655 = vpop.permute.xlu0 %654
        %656 = vrot.lane.b32.xlu0 %v462, 8
        %v657 = vpop.permute.xlu0 %656
        %658 = vrot.lane.b32.xlu0 %v465, 8
        %v659 = vpop.permute.xlu0 %658
        %660 = vrot.lane.b32.xlu0 %v467, 8
        %v661 = vpop.permute.xlu0 %660
        %662 = vrot.lane.b32.xlu0 %v470, 8
        %v663 = vpop.permute.xlu0 %662
        %664 = vrot.lane.b32.xlu0 %v472, 8
        %v665 = vpop.permute.xlu0 %664
        %666 = vrot.lane.b32.xlu0 %v475, 8
        %v667 = vpop.permute.xlu0 %666
        %668 = vrot.lane.b32.xlu0 %v477, 8
        %v669 = vpop.permute.xlu0 %668
        %670 = vrot.lane.b32.xlu0 %v480, 8
        %v671 = vpop.permute.xlu0 %670
        %672 = vrot.lane.b32.xlu0 %v482, 8
        %v673 = vpop.permute.xlu0 %672
        %674 = vrot.lane.b32.xlu0 %v485, 8
        %v675 = vpop.permute.xlu0 %674
        %676 = vrot.lane.b32.xlu0 %v487, 8
        %v677 = vpop.permute.xlu0 %676
        %678 = vrot.lane.b32.xlu0 %v490, 8
        %v679 = vpop.permute.xlu0 %678
        %680 = vrot.lane.b32.xlu0 %v492, 8
        %v681 = vpop.permute.xlu0 %680
        %682 = vrot.lane.b32.xlu0 %v495, 8
        %v683 = vpop.permute.xlu0 %682
        %684 = vrot.lane.b32.xlu0 %v497, 8
        %v685 = vpop.permute.xlu0 %684
        %686 = vrot.lane.b32.xlu0 %v500, 8
        %v687 = vpop.permute.xlu0 %686
        %688 = vrot.lane.b32.xlu0 %v502, 8
        %v689 = vpop.permute.xlu0 %688
        %690 = vrot.lane.b32.xlu0 %v505, 8
        %v691 = vpop.permute.xlu0 %690
        %692 = vrot.lane.b32.xlu0 %v507, 8
        %v693 = vpop.permute.xlu0 %692
        %726 = vrot.lane.b32.xlu0 %v247, 12
        %v727 = vpop.permute.xlu0 %726
        %728 = vrot.lane.b32.xlu0 %v248, 12
        %v729 = vpop.permute.xlu0 %728
        %730 = vrot.lane.b32.xlu0 %v250, 12
        %v731 = vpop.permute.xlu0 %730
        %732 = vrot.lane.b32.xlu0 %v251, 12
        %v733 = vpop.permute.xlu0 %732
        %734 = vrot.lane.b32.xlu0 %v253, 12
        %v735 = vpop.permute.xlu0 %734
        %736 = vrot.lane.b32.xlu0 %v254, 12
        %v737 = vpop.permute.xlu0 %736
        %738 = vrot.lane.b32.xlu0 %v256, 12
        %v739 = vpop.permute.xlu0 %738
        %740 = vrot.lane.b32.xlu0 %v257, 12
        %v741 = vpop.permute.xlu0 %740
        %742 = vrot.lane.b32.xlu0 %v259, 12
        %v743 = vpop.permute.xlu0 %742
        %744 = vrot.lane.b32.xlu0 %v260, 12
        %v745 = vpop.permute.xlu0 %744
        %746 = vrot.lane.b32.xlu0 %v262, 12
        %v747 = vpop.permute.xlu0 %746
        %748 = vrot.lane.b32.xlu0 %v263, 12
        %v749 = vpop.permute.xlu0 %748
        %750 = vrot.lane.b32.xlu0 %v265, 12
        %v751 = vpop.permute.xlu0 %750
        %752 = vrot.lane.b32.xlu0 %v266, 12
        %v753 = vpop.permute.xlu0 %752
        %754 = vrot.lane.b32.xlu0 %v268, 12
        %v755 = vpop.permute.xlu0 %754
        %756 = vrot.lane.b32.xlu0 %v269, 12
        %v757 = vpop.permute.xlu0 %756
        %758 = vrot.lane.b32.xlu0 %v271, 12
        %v759 = vpop.permute.xlu0 %758
        %760 = vrot.lane.b32.xlu0 %v272, 12
        %v761 = vpop.permute.xlu0 %760
        %762 = vrot.lane.b32.xlu0 %v274, 12
        %v763 = vpop.permute.xlu0 %762
        %764 = vrot.lane.b32.xlu0 %v275, 12
        %v765 = vpop.permute.xlu0 %764
        %766 = vrot.lane.b32.xlu0 %v277, 12
        %v767 = vpop.permute.xlu0 %766
        %768 = vrot.lane.b32.xlu0 %v278, 12
        %v769 = vpop.permute.xlu0 %768
        %770 = vrot.lane.b32.xlu0 %v280, 12
        %v771 = vpop.permute.xlu0 %770
        %772 = vrot.lane.b32.xlu0 %v281, 12
        %v773 = vpop.permute.xlu0 %772
        %774 = vrot.lane.b32.xlu0 %v283, 12
        %v775 = vpop.permute.xlu0 %774
        %776 = vrot.lane.b32.xlu0 %v284, 12
        %v777 = vpop.permute.xlu0 %776
        %778 = vrot.lane.b32.xlu0 %v286, 12
        %v779 = vpop.permute.xlu0 %778
        %780 = vrot.lane.b32.xlu0 %v287, 12
        %v781 = vpop.permute.xlu0 %780
        %782 = vrot.lane.b32.xlu0 %v289, 12
        %v783 = vpop.permute.xlu0 %782
        %784 = vrot.lane.b32.xlu0 %v290, 12
        %v785 = vpop.permute.xlu0 %784
        %786 = vrot.lane.b32.xlu0 %v292, 12
        %v787 = vpop.permute.xlu0 %786
        %788 = vrot.lane.b32.xlu0 %v293, 12
        %v789 = vpop.permute.xlu0 %788
        %822 = vrot.lane.b32.xlu0 %v354, 16
        %v823 = vpop.permute.xlu0 %822
        %824 = vrot.lane.b32.xlu0 %v356, 16
        %v825 = vpop.permute.xlu0 %824
        %826 = vrot.lane.b32.xlu0 %v359, 16
        %v827 = vpop.permute.xlu0 %826
        %828 = vrot.lane.b32.xlu0 %v361, 16
        %v829 = vpop.permute.xlu0 %828
        %830 = vrot.lane.b32.xlu0 %v364, 16
        %v831 = vpop.permute.xlu0 %830
        %832 = vrot.lane.b32.xlu0 %v366, 16
        %v833 = vpop.permute.xlu0 %832
        %834 = vrot.lane.b32.xlu0 %v369, 16
        %v835 = vpop.permute.xlu0 %834
        %836 = vrot.lane.b32.xlu0 %v371, 16
        %v837 = vpop.permute.xlu0 %836
        %838 = vrot.lane.b32.xlu0 %v374, 16
        %v839 = vpop.permute.xlu0 %838
        %840 = vrot.lane.b32.xlu0 %v376, 16
        %v841 = vpop.permute.xlu0 %840
        %842 = vrot.lane.b32.xlu0 %v379, 16
        %v843 = vpop.permute.xlu0 %842
        %844 = vrot.lane.b32.xlu0 %v381, 16
        %v845 = vpop.permute.xlu0 %844
        %846 = vrot.lane.b32.xlu0 %v384, 16
        %v847 = vpop.permute.xlu0 %846
        %848 = vrot.lane.b32.xlu0 %v386, 16
        %v849 = vpop.permute.xlu0 %848
        %850 = vrot.lane.b32.xlu0 %v389, 16
        %v851 = vpop.permute.xlu0 %850
        %852 = vrot.lane.b32.xlu0 %v391, 16
        %v853 = vpop.permute.xlu0 %852
        %854 = vrot.lane.b32.xlu0 %v394, 16
        %v855 = vpop.permute.xlu0 %854
        %856 = vrot.lane.b32.xlu0 %v396, 16
        %v857 = vpop.permute.xlu0 %856
        %858 = vrot.lane.b32.xlu0 %v399, 16
        %v859 = vpop.permute.xlu0 %858
        %860 = vrot.lane.b32.xlu0 %v401, 16
        %v861 = vpop.permute.xlu0 %860
        %862 = vrot.lane.b32.xlu0 %v404, 16
        %v863 = vpop.permute.xlu0 %862
        %864 = vrot.lane.b32.xlu0 %v406, 16
        %v865 = vpop.permute.xlu0 %864
        %866 = vrot.lane.b32.xlu0 %v409, 16
        %v867 = vpop.permute.xlu0 %866
        %868 = vrot.lane.b32.xlu0 %v411, 16
        %v869 = vpop.permute.xlu0 %868
        %870 = vrot.lane.b32.xlu0 %v414, 16
        %v871 = vpop.permute.xlu0 %870
        %872 = vrot.lane.b32.xlu0 %v416, 16
        %v873 = vpop.permute.xlu0 %872
        %874 = vrot.lane.b32.xlu0 %v419, 16
        %v875 = vpop.permute.xlu0 %874
        %876 = vrot.lane.b32.xlu0 %v421, 16
        %v877 = vpop.permute.xlu0 %876
        %878 = vrot.lane.b32.xlu0 %v424, 16
        %v879 = vpop.permute.xlu0 %878
        %880 = vrot.lane.b32.xlu0 %v426, 16
        %v881 = vpop.permute.xlu0 %880
        %882 = vrot.lane.b32.xlu0 %v513, 16
        %v883 = vpop.permute.xlu0 %882
        %884 = vrot.lane.b32.xlu0 %v515, 16
        %v885 = vpop.permute.xlu0 %884
        %918 = vrot.lane.b32.xlu0 %v435, 20
        %v919 = vpop.permute.xlu0 %918
        %920 = vrot.lane.b32.xlu0 %v437, 20
        %v921 = vpop.permute.xlu0 %920
        %922 = vrot.lane.b32.xlu0 %v440, 20
        %v923 = vpop.permute.xlu0 %922
        %924 = vrot.lane.b32.xlu0 %v442, 20
        %v925 = vpop.permute.xlu0 %924
        %926 = vrot.lane.b32.xlu0 %v445, 20
        %v927 = vpop.permute.xlu0 %926
        %928 = vrot.lane.b32.xlu0 %v447, 20
        %v929 = vpop.permute.xlu0 %928
        %930 = vrot.lane.b32.xlu0 %v450, 20
        %v931 = vpop.permute.xlu0 %930
        %932 = vrot.lane.b32.xlu0 %v452, 20
        %v933 = vpop.permute.xlu0 %932
        %934 = vrot.lane.b32.xlu0 %v455, 20
        %v935 = vpop.permute.xlu0 %934
        %936 = vrot.lane.b32.xlu0 %v457, 20
        %v937 = vpop.permute.xlu0 %936
        %938 = vrot.lane.b32.xlu0 %v460, 20
        %v939 = vpop.permute.xlu0 %938
        %940 = vrot.lane.b32.xlu0 %v462, 20
        %v941 = vpop.permute.xlu0 %940
        %942 = vrot.lane.b32.xlu0 %v465, 20
        %v943 = vpop.permute.xlu0 %942
        %944 = vrot.lane.b32.xlu0 %v467, 20
        %v945 = vpop.permute.xlu0 %944
        %946 = vrot.lane.b32.xlu0 %v470, 20
        %v947 = vpop.permute.xlu0 %946
        %948 = vrot.lane.b32.xlu0 %v472, 20
        %v949 = vpop.permute.xlu0 %948
        %950 = vrot.lane.b32.xlu0 %v475, 20
        %v951 = vpop.permute.xlu0 %950
        %952 = vrot.lane.b32.xlu0 %v477, 20
        %v953 = vpop.permute.xlu0 %952
        %954 = vrot.lane.b32.xlu0 %v480, 20
        %v955 = vpop.permute.xlu0 %954
        %956 = vrot.lane.b32.xlu0 %v482, 20
        %v957 = vpop.permute.xlu0 %956
        %958 = vrot.lane.b32.xlu0 %v485, 20
        %v959 = vpop.permute.xlu0 %958
        %960 = vrot.lane.b32.xlu0 %v487, 20
        %v961 = vpop.permute.xlu0 %960
        %962 = vrot.lane.b32.xlu0 %v490, 20
        %v963 = vpop.permute.xlu0 %962
        %964 = vrot.lane.b32.xlu0 %v492, 20
        %v965 = vpop.permute.xlu0 %964
        %966 = vrot.lane.b32.xlu0 %v495, 20
        %v967 = vpop.permute.xlu0 %966
        %968 = vrot.lane.b32.xlu0 %v497, 20
        %v969 = vpop.permute.xlu0 %968
        %970 = vrot.lane.b32.xlu0 %v500, 20
        %v971 = vpop.permute.xlu0 %970
        %972 = vrot.lane.b32.xlu0 %v502, 20
        %v973 = vpop.permute.xlu0 %972
        %974 = vrot.lane.b32.xlu0 %v505, 20
        %v975 = vpop.permute.xlu0 %974
        %976 = vrot.lane.b32.xlu0 %v507, 20
        %v977 = vpop.permute.xlu0 %976
        %978 = vrot.lane.b32.xlu0 %v518, 20
        %v979 = vpop.permute.xlu0 %978
        %980 = vrot.lane.b32.xlu0 %v520, 20
        %v981 = vpop.permute.xlu0 %980
        %1014 = vrot.lane.b32.xlu0 %v250, 24
        %v1015 = vpop.permute.xlu0 %1014
        %1016 = vrot.lane.b32.xlu0 %v251, 24
        %v1017 = vpop.permute.xlu0 %1016
        %1018 = vrot.lane.b32.xlu0 %v253, 24
        %v1019 = vpop.permute.xlu0 %1018
        %1020 = vrot.lane.b32.xlu0 %v254, 24
        %v1021 = vpop.permute.xlu0 %1020
        %1022 = vrot.lane.b32.xlu0 %v256, 24
        %v1023 = vpop.permute.xlu0 %1022
        %1024 = vrot.lane.b32.xlu0 %v257, 24
        %v1025 = vpop.permute.xlu0 %1024
        %1026 = vrot.lane.b32.xlu0 %v259, 24
        %v1027 = vpop.permute.xlu0 %1026
        %1028 = vrot.lane.b32.xlu0 %v260, 24
        %v1029 = vpop.permute.xlu0 %1028
        %1030 = vrot.lane.b32.xlu0 %v262, 24
        %v1031 = vpop.permute.xlu0 %1030
        %1032 = vrot.lane.b32.xlu0 %v263, 24
        %v1033 = vpop.permute.xlu0 %1032
        %1034 = vrot.lane.b32.xlu0 %v265, 24
        %v1035 = vpop.permute.xlu0 %1034
        %1036 = vrot.lane.b32.xlu0 %v266, 24
        %v1037 = vpop.permute.xlu0 %1036
        %1038 = vrot.lane.b32.xlu0 %v268, 24
        %v1039 = vpop.permute.xlu0 %1038
        %1040 = vrot.lane.b32.xlu0 %v269, 24
        %v1041 = vpop.permute.xlu0 %1040
        %1042 = vrot.lane.b32.xlu0 %v271, 24
        %v1043 = vpop.permute.xlu0 %1042
        %1044 = vrot.lane.b32.xlu0 %v272, 24
        %v1045 = vpop.permute.xlu0 %1044
        %1046 = vrot.lane.b32.xlu0 %v274, 24
        %v1047 = vpop.permute.xlu0 %1046
        %1048 = vrot.lane.b32.xlu0 %v275, 24
        %v1049 = vpop.permute.xlu0 %1048
        %1050 = vrot.lane.b32.xlu0 %v277, 24
        %v1051 = vpop.permute.xlu0 %1050
        %1052 = vrot.lane.b32.xlu0 %v278, 24
        %v1053 = vpop.permute.xlu0 %1052
        %1054 = vrot.lane.b32.xlu0 %v280, 24
        %v1055 = vpop.permute.xlu0 %1054
        %1056 = vrot.lane.b32.xlu0 %v281, 24
        %v1057 = vpop.permute.xlu0 %1056
        %1058 = vrot.lane.b32.xlu0 %v283, 24
        %v1059 = vpop.permute.xlu0 %1058
        %1060 = vrot.lane.b32.xlu0 %v284, 24
        %v1061 = vpop.permute.xlu0 %1060
        %1062 = vrot.lane.b32.xlu0 %v286, 24
        %v1063 = vpop.permute.xlu0 %1062
        %1064 = vrot.lane.b32.xlu0 %v287, 24
        %v1065 = vpop.permute.xlu0 %1064
        %1066 = vrot.lane.b32.xlu0 %v289, 24
        %v1067 = vpop.permute.xlu0 %1066
        %1068 = vrot.lane.b32.xlu0 %v290, 24
        %v1069 = vpop.permute.xlu0 %1068
        %1070 = vrot.lane.b32.xlu0 %v292, 24
        %v1071 = vpop.permute.xlu0 %1070
        %1072 = vrot.lane.b32.xlu0 %v293, 24
        %v1073 = vpop.permute.xlu0 %1072
        %1074 = vrot.lane.b32.xlu0 %v295, 24
        %v1075 = vpop.permute.xlu0 %1074
        %1076 = vrot.lane.b32.xlu0 %v296, 24
        %v1077 = vpop.permute.xlu0 %1076
        %1110 = vrot.lane.b32.xlu0 %v359, 28
        %v1111 = vpop.permute.xlu0 %1110
        %1112 = vrot.lane.b32.xlu0 %v361, 28
        %v1113 = vpop.permute.xlu0 %1112
        %1114 = vrot.lane.b32.xlu0 %v364, 28
        %v1115 = vpop.permute.xlu0 %1114
        %1116 = vrot.lane.b32.xlu0 %v366, 28
        %v1117 = vpop.permute.xlu0 %1116
        %1118 = vrot.lane.b32.xlu0 %v369, 28
        %v1119 = vpop.permute.xlu0 %1118
        %1120 = vrot.lane.b32.xlu0 %v371, 28
        %v1121 = vpop.permute.xlu0 %1120
        %1122 = vrot.lane.b32.xlu0 %v374, 28
        %v1123 = vpop.permute.xlu0 %1122
        %1124 = vrot.lane.b32.xlu0 %v376, 28
        %v1125 = vpop.permute.xlu0 %1124
        %1126 = vrot.lane.b32.xlu0 %v379, 28
        %v1127 = vpop.permute.xlu0 %1126
        %1128 = vrot.lane.b32.xlu0 %v381, 28
        %v1129 = vpop.permute.xlu0 %1128
        %1130 = vrot.lane.b32.xlu0 %v384, 28
        %v1131 = vpop.permute.xlu0 %1130
        %1132 = vrot.lane.b32.xlu0 %v386, 28
        %v1133 = vpop.permute.xlu0 %1132
        %1134 = vrot.lane.b32.xlu0 %v389, 28
        %v1135 = vpop.permute.xlu0 %1134
        %1136 = vrot.lane.b32.xlu0 %v391, 28
        %v1137 = vpop.permute.xlu0 %1136
        %1138 = vrot.lane.b32.xlu0 %v394, 28
        %v1139 = vpop.permute.xlu0 %1138
        %1140 = vrot.lane.b32.xlu0 %v396, 28
        %v1141 = vpop.permute.xlu0 %1140
        %1142 = vrot.lane.b32.xlu0 %v399, 28
        %v1143 = vpop.permute.xlu0 %1142
        %1144 = vrot.lane.b32.xlu0 %v401, 28
        %v1145 = vpop.permute.xlu0 %1144
        %1146 = vrot.lane.b32.xlu0 %v404, 28
        %v1147 = vpop.permute.xlu0 %1146
        %1148 = vrot.lane.b32.xlu0 %v406, 28
        %v1149 = vpop.permute.xlu0 %1148
        %1150 = vrot.lane.b32.xlu0 %v409, 28
        %v1151 = vpop.permute.xlu0 %1150
        %1152 = vrot.lane.b32.xlu0 %v411, 28
        %v1153 = vpop.permute.xlu0 %1152
        %1154 = vrot.lane.b32.xlu0 %v414, 28
        %v1155 = vpop.permute.xlu0 %1154
        %1156 = vrot.lane.b32.xlu0 %v416, 28
        %v1157 = vpop.permute.xlu0 %1156
        %1158 = vrot.lane.b32.xlu0 %v419, 28
        %v1159 = vpop.permute.xlu0 %1158
        %1160 = vrot.lane.b32.xlu0 %v421, 28
        %v1161 = vpop.permute.xlu0 %1160
        %1162 = vrot.lane.b32.xlu0 %v424, 28
        %v1163 = vpop.permute.xlu0 %1162
        %1164 = vrot.lane.b32.xlu0 %v426, 28
        %v1165 = vpop.permute.xlu0 %1164
        %1166 = vrot.lane.b32.xlu0 %v513, 28
        %v1167 = vpop.permute.xlu0 %1166
        %1168 = vrot.lane.b32.xlu0 %v515, 28
        %v1169 = vpop.permute.xlu0 %1168
        %1170 = vrot.lane.b32.xlu0 %v526, 28
        %v1171 = vpop.permute.xlu0 %1170
        %1172 = vrot.lane.b32.xlu0 %v528, 28
        %v1173 = vpop.permute.xlu0 %1172
        %1206 = vrot.lane.b32.xlu0 %v440, 32
        %v1207 = vpop.permute.xlu0 %1206
        %1208 = vrot.lane.b32.xlu0 %v442, 32
        %v1209 = vpop.permute.xlu0 %1208
        %1210 = vrot.lane.b32.xlu0 %v445, 32
        %v1211 = vpop.permute.xlu0 %1210
        %1212 = vrot.lane.b32.xlu0 %v447, 32
        %v1213 = vpop.permute.xlu0 %1212
        %1214 = vrot.lane.b32.xlu0 %v450, 32
        %v1215 = vpop.permute.xlu0 %1214
        %1216 = vrot.lane.b32.xlu0 %v452, 32
        %v1217 = vpop.permute.xlu0 %1216
        %1218 = vrot.lane.b32.xlu0 %v455, 32
        %v1219 = vpop.permute.xlu0 %1218
        %1220 = vrot.lane.b32.xlu0 %v457, 32
        %v1221 = vpop.permute.xlu0 %1220
        %1222 = vrot.lane.b32.xlu0 %v460, 32
        %v1223 = vpop.permute.xlu0 %1222
        %1224 = vrot.lane.b32.xlu0 %v462, 32
        %v1225 = vpop.permute.xlu0 %1224
        %1226 = vrot.lane.b32.xlu0 %v465, 32
        %v1227 = vpop.permute.xlu0 %1226
        %1228 = vrot.lane.b32.xlu0 %v467, 32
        %v1229 = vpop.permute.xlu0 %1228
        %1230 = vrot.lane.b32.xlu0 %v470, 32
        %v1231 = vpop.permute.xlu0 %1230
        %1232 = vrot.lane.b32.xlu0 %v472, 32
        %v1233 = vpop.permute.xlu0 %1232
        %1234 = vrot.lane.b32.xlu0 %v475, 32
        %v1235 = vpop.permute.xlu0 %1234
        %1236 = vrot.lane.b32.xlu0 %v477, 32
        %v1237 = vpop.permute.xlu0 %1236
        %1238 = vrot.lane.b32.xlu0 %v480, 32
        %v1239 = vpop.permute.xlu0 %1238
        %1240 = vrot.lane.b32.xlu0 %v482, 32
        %v1241 = vpop.permute.xlu0 %1240
        %1242 = vrot.lane.b32.xlu0 %v485, 32
        %v1243 = vpop.permute.xlu0 %1242
        %1244 = vrot.lane.b32.xlu0 %v487, 32
        %v1245 = vpop.permute.xlu0 %1244
        %1246 = vrot.lane.b32.xlu0 %v490, 32
        %v1247 = vpop.permute.xlu0 %1246
        %1248 = vrot.lane.b32.xlu0 %v492, 32
        %v1249 = vpop.permute.xlu0 %1248
        %1250 = vrot.lane.b32.xlu0 %v495, 32
        %v1251 = vpop.permute.xlu0 %1250
        %1252 = vrot.lane.b32.xlu0 %v497, 32
        %v1253 = vpop.permute.xlu0 %1252
        %1254 = vrot.lane.b32.xlu0 %v500, 32
        %v1255 = vpop.permute.xlu0 %1254
        %1256 = vrot.lane.b32.xlu0 %v502, 32
        %v1257 = vpop.permute.xlu0 %1256
        %1258 = vrot.lane.b32.xlu0 %v505, 32
        %v1259 = vpop.permute.xlu0 %1258
        %1260 = vrot.lane.b32.xlu0 %v507, 32
        %v1261 = vpop.permute.xlu0 %1260
        %1262 = vrot.lane.b32.xlu0 %v518, 32
        %v1263 = vpop.permute.xlu0 %1262
        %1264 = vrot.lane.b32.xlu0 %v520, 32
        %v1265 = vpop.permute.xlu0 %1264
        %1266 = vrot.lane.b32.xlu0 %v531, 32
        %v1267 = vpop.permute.xlu0 %1266
        %1268 = vrot.lane.b32.xlu0 %v533, 32
        %v1269 = vpop.permute.xlu0 %1268
        %vm1302 = vcmask 31744
        %v1303 = vsel %vm1302, %v244, %v535
        %v1304 = vsel %vm1302, %v245, %v537
        %v1305 = vsel %vm1302, %v247, %v539
        %v1306 = vsel %vm1302, %v248, %v541
        %v1307 = vsel %vm1302, %v250, %v543
        %v1308 = vsel %vm1302, %v251, %v545
        %v1309 = vsel %vm1302, %v253, %v547
        %v1310 = vsel %vm1302, %v254, %v549
        %v1311 = vsel %vm1302, %v256, %v551
        %v1312 = vsel %vm1302, %v257, %v553
        %v1313 = vsel %vm1302, %v259, %v555
        %v1314 = vsel %vm1302, %v260, %v557
        %v1315 = vsel %vm1302, %v262, %v559
        %v1316 = vsel %vm1302, %v263, %v561
        %v1317 = vsel %vm1302, %v265, %v563
        %v1318 = vsel %vm1302, %v266, %v565
        %v1319 = vsel %vm1302, %v268, %v567
        %v1320 = vsel %vm1302, %v269, %v569
        %v1321 = vsel %vm1302, %v271, %v571
        %v1322 = vsel %vm1302, %v272, %v573
        %v1323 = vsel %vm1302, %v274, %v575
        %v1324 = vsel %vm1302, %v275, %v577
        %v1325 = vsel %vm1302, %v277, %v579
        %v1326 = vsel %vm1302, %v278, %v581
        %v1327 = vsel %vm1302, %v280, %v583
        %v1328 = vsel %vm1302, %v281, %v585
        %v1329 = vsel %vm1302, %v283, %v587
        %v1330 = vsel %vm1302, %v284, %v589
        %v1331 = vsel %vm1302, %v286, %v591
        %v1332 = vsel %vm1302, %v287, %v593
        %v1333 = vsel %vm1302, %v289, %v595
        %v1334 = vsel %vm1302, %v290, %v597
        %vm1335 = vcmask 64512
        %v1336 = vsel %vm1335, %v1303, %v631
        %v1337 = vsel %vm1335, %v1304, %v633
        %v1338 = vsel %vm1335, %v1305, %v635
        %v1339 = vsel %vm1335, %v1306, %v637
        %v1340 = vsel %vm1335, %v1307, %v639
        %v1341 = vsel %vm1335, %v1308, %v641
        %v1342 = vsel %vm1335, %v1309, %v643
        %v1343 = vsel %vm1335, %v1310, %v645
        %v1344 = vsel %vm1335, %v1311, %v647
        %v1345 = vsel %vm1335, %v1312, %v649
        %v1346 = vsel %vm1335, %v1313, %v651
        %v1347 = vsel %vm1335, %v1314, %v653
        %v1348 = vsel %vm1335, %v1315, %v655
        %v1349 = vsel %vm1335, %v1316, %v657
        %v1350 = vsel %vm1335, %v1317, %v659
        %v1351 = vsel %vm1335, %v1318, %v661
        %v1352 = vsel %vm1335, %v1319, %v663
        %v1353 = vsel %vm1335, %v1320, %v665
        %v1354 = vsel %vm1335, %v1321, %v667
        %v1355 = vsel %vm1335, %v1322, %v669
        %v1356 = vsel %vm1335, %v1323, %v671
        %v1357 = vsel %vm1335, %v1324, %v673
        %v1358 = vsel %vm1335, %v1325, %v675
        %v1359 = vsel %vm1335, %v1326, %v677
        %v1360 = vsel %vm1335, %v1327, %v679
        %v1361 = vsel %vm1335, %v1328, %v681
        %v1362 = vsel %vm1335, %v1329, %v683
        %v1363 = vsel %vm1335, %v1330, %v685
        %v1364 = vsel %vm1335, %v1331, %v687
        %v1365 = vsel %vm1335, %v1332, %v689
        %v1366 = vsel %vm1335, %v1333, %v691
        %v1367 = vsel %vm1335, %v1334, %v693
        %vm1368 = vcmask 97280
        %v1369 = vsel %vm1368, %v1336, %v727
        %v1370 = vsel %vm1368, %v1337, %v729
        %v1371 = vsel %vm1368, %v1338, %v731
        %v1372 = vsel %vm1368, %v1339, %v733
        %v1373 = vsel %vm1368, %v1340, %v735
        %v1374 = vsel %vm1368, %v1341, %v737
        %v1375 = vsel %vm1368, %v1342, %v739
        %v1376 = vsel %vm1368, %v1343, %v741
        %v1377 = vsel %vm1368, %v1344, %v743
        %v1378 = vsel %vm1368, %v1345, %v745
        %v1379 = vsel %vm1368, %v1346, %v747
        %v1380 = vsel %vm1368, %v1347, %v749
        %v1381 = vsel %vm1368, %v1348, %v751
        %v1382 = vsel %vm1368, %v1349, %v753
        %v1383 = vsel %vm1368, %v1350, %v755
        %v1384 = vsel %vm1368, %v1351, %v757
        %v1385 = vsel %vm1368, %v1352, %v759
        %v1386 = vsel %vm1368, %v1353, %v761
        %v1387 = vsel %vm1368, %v1354, %v763
        %v1388 = vsel %vm1368, %v1355, %v765
        %v1389 = vsel %vm1368, %v1356, %v767
        %v1390 = vsel %vm1368, %v1357, %v769
        %v1391 = vsel %vm1368, %v1358, %v771
        %v1392 = vsel %vm1368, %v1359, %v773
        %v1393 = vsel %vm1368, %v1360, %v775
        %v1394 = vsel %vm1368, %v1361, %v777
        %v1395 = vsel %vm1368, %v1362, %v779
        %v1396 = vsel %vm1368, %v1363, %v781
        %v1397 = vsel %vm1368, %v1364, %v783
        %v1398 = vsel %vm1368, %v1365, %v785
        %v1399 = vsel %vm1368, %v1366, %v787
        %v1400 = vsel %vm1368, %v1367, %v789
        %vm1401 = vcmask 130048
        %v1402 = vsel %vm1401, %v1369, %v823
        %v1403 = vsel %vm1401, %v1370, %v825
        %v1404 = vsel %vm1401, %v1371, %v827
        %v1405 = vsel %vm1401, %v1372, %v829
        %v1406 = vsel %vm1401, %v1373, %v831
        %v1407 = vsel %vm1401, %v1374, %v833
        %v1408 = vsel %vm1401, %v1375, %v835
        %v1409 = vsel %vm1401, %v1376, %v837
        %v1410 = vsel %vm1401, %v1377, %v839
        %v1411 = vsel %vm1401, %v1378, %v841
        %v1412 = vsel %vm1401, %v1379, %v843
        %v1413 = vsel %vm1401, %v1380, %v845
        %v1414 = vsel %vm1401, %v1381, %v847
        %v1415 = vsel %vm1401, %v1382, %v849
        %v1416 = vsel %vm1401, %v1383, %v851
        %v1417 = vsel %vm1401, %v1384, %v853
        %v1418 = vsel %vm1401, %v1385, %v855
        %v1419 = vsel %vm1401, %v1386, %v857
        %v1420 = vsel %vm1401, %v1387, %v859
        %v1421 = vsel %vm1401, %v1388, %v861
        %v1422 = vsel %vm1401, %v1389, %v863
        %v1423 = vsel %vm1401, %v1390, %v865
        %v1424 = vsel %vm1401, %v1391, %v867
        %v1425 = vsel %vm1401, %v1392, %v869
        %v1426 = vsel %vm1401, %v1393, %v871
        %v1427 = vsel %vm1401, %v1394, %v873
        %v1428 = vsel %vm1401, %v1395, %v875
        %v1429 = vsel %vm1401, %v1396, %v877
        %v1430 = vsel %vm1401, %v1397, %v879
        %v1431 = vsel %vm1401, %v1398, %v881
        %v1432 = vsel %vm1401, %v1399, %v883
        %v1433 = vsel %vm1401, %v1400, %v885
        %vm1434 = vcmask 162816
        %v1435 = vsel %vm1434, %v1402, %v919
        %v1436 = vsel %vm1434, %v1403, %v921
        %v1437 = vsel %vm1434, %v1404, %v923
        %v1438 = vsel %vm1434, %v1405, %v925
        %v1439 = vsel %vm1434, %v1406, %v927
        %v1440 = vsel %vm1434, %v1407, %v929
        %v1441 = vsel %vm1434, %v1408, %v931
        %v1442 = vsel %vm1434, %v1409, %v933
        %v1443 = vsel %vm1434, %v1410, %v935
        %v1444 = vsel %vm1434, %v1411, %v937
        %v1445 = vsel %vm1434, %v1412, %v939
        %v1446 = vsel %vm1434, %v1413, %v941
        %v1447 = vsel %vm1434, %v1414, %v943
        %v1448 = vsel %vm1434, %v1415, %v945
        %v1449 = vsel %vm1434, %v1416, %v947
        %v1450 = vsel %vm1434, %v1417, %v949
        %v1451 = vsel %vm1434, %v1418, %v951
        %v1452 = vsel %vm1434, %v1419, %v953
        %v1453 = vsel %vm1434, %v1420, %v955
        %v1454 = vsel %vm1434, %v1421, %v957
        %v1455 = vsel %vm1434, %v1422, %v959
        %v1456 = vsel %vm1434, %v1423, %v961
        %v1457 = vsel %vm1434, %v1424, %v963
        %v1458 = vsel %vm1434, %v1425, %v965
        %v1459 = vsel %vm1434, %v1426, %v967
        %v1460 = vsel %vm1434, %v1427, %v969
        %v1461 = vsel %vm1434, %v1428, %v971
        %v1462 = vsel %vm1434, %v1429, %v973
        %v1463 = vsel %vm1434, %v1430, %v975
        %v1464 = vsel %vm1434, %v1431, %v977
        %v1465 = vsel %vm1434, %v1432, %v979
        %v1466 = vsel %vm1434, %v1433, %v981
        %vm1467 = vcmask 195584
        %v1468 = vsel %vm1467, %v1435, %v1015
        %v1469 = vsel %vm1467, %v1436, %v1017
        %v1470 = vsel %vm1467, %v1437, %v1019
        %v1471 = vsel %vm1467, %v1438, %v1021
        %v1472 = vsel %vm1467, %v1439, %v1023
        %v1473 = vsel %vm1467, %v1440, %v1025
        %v1474 = vsel %vm1467, %v1441, %v1027
        %v1475 = vsel %vm1467, %v1442, %v1029
        %v1476 = vsel %vm1467, %v1443, %v1031
        %v1477 = vsel %vm1467, %v1444, %v1033
        %v1478 = vsel %vm1467, %v1445, %v1035
        %v1479 = vsel %vm1467, %v1446, %v1037
        %v1480 = vsel %vm1467, %v1447, %v1039
        %v1481 = vsel %vm1467, %v1448, %v1041
        %v1482 = vsel %vm1467, %v1449, %v1043
        %v1483 = vsel %vm1467, %v1450, %v1045
        %v1484 = vsel %vm1467, %v1451, %v1047
        %v1485 = vsel %vm1467, %v1452, %v1049
        %v1486 = vsel %vm1467, %v1453, %v1051
        %v1487 = vsel %vm1467, %v1454, %v1053
        %v1488 = vsel %vm1467, %v1455, %v1055
        %v1489 = vsel %vm1467, %v1456, %v1057
        %v1490 = vsel %vm1467, %v1457, %v1059
        %v1491 = vsel %vm1467, %v1458, %v1061
        %v1492 = vsel %vm1467, %v1459, %v1063
        %v1493 = vsel %vm1467, %v1460, %v1065
        %v1494 = vsel %vm1467, %v1461, %v1067
        %v1495 = vsel %vm1467, %v1462, %v1069
        %v1496 = vsel %vm1467, %v1463, %v1071
        %v1497 = vsel %vm1467, %v1464, %v1073
        %v1498 = vsel %vm1467, %v1465, %v1075
        %v1499 = vsel %vm1467, %v1466, %v1077
        %vm1500 = vcmask 228352
        %v1501 = vsel %vm1500, %v1468, %v1111
        %v1502 = vsel %vm1500, %v1469, %v1113
        %v1503 = vsel %vm1500, %v1470, %v1115
        %v1504 = vsel %vm1500, %v1471, %v1117
        %v1505 = vsel %vm1500, %v1472, %v1119
        %v1506 = vsel %vm1500, %v1473, %v1121
        %v1507 = vsel %vm1500, %v1474, %v1123
        %v1508 = vsel %vm1500, %v1475, %v1125
        %v1509 = vsel %vm1500, %v1476, %v1127
        %v1510 = vsel %vm1500, %v1477, %v1129
        %v1511 = vsel %vm1500, %v1478, %v1131
        %v1512 = vsel %vm1500, %v1479, %v1133
        %v1513 = vsel %vm1500, %v1480, %v1135
        %v1514 = vsel %vm1500, %v1481, %v1137
        %v1515 = vsel %vm1500, %v1482, %v1139
        %v1516 = vsel %vm1500, %v1483, %v1141
        %v1517 = vsel %vm1500, %v1484, %v1143
        %v1518 = vsel %vm1500, %v1485, %v1145
        %v1519 = vsel %vm1500, %v1486, %v1147
        %v1520 = vsel %vm1500, %v1487, %v1149
        %v1521 = vsel %vm1500, %v1488, %v1151
        %v1522 = vsel %vm1500, %v1489, %v1153
        %v1523 = vsel %vm1500, %v1490, %v1155
        %v1524 = vsel %vm1500, %v1491, %v1157
        %v1525 = vsel %vm1500, %v1492, %v1159
        %v1526 = vsel %vm1500, %v1493, %v1161
        %v1527 = vsel %vm1500, %v1494, %v1163
        %v1528 = vsel %vm1500, %v1495, %v1165
        %v1529 = vsel %vm1500, %v1496, %v1167
        %v1530 = vsel %vm1500, %v1497, %v1169
        %v1531 = vsel %vm1500, %v1498, %v1171
        %v1532 = vsel %vm1500, %v1499, %v1173
        %vm1533 = vcmask 261120
        %v1534 = vsel %vm1533, %v1501, %v1207
        %v1535 = vsel %vm1533, %v1502, %v1209
        %v1536 = vsel %vm1533, %v1503, %v1211
        %v1537 = vsel %vm1533, %v1504, %v1213
        %v1538 = vsel %vm1533, %v1505, %v1215
        %v1539 = vsel %vm1533, %v1506, %v1217
        %v1540 = vsel %vm1533, %v1507, %v1219
        %v1541 = vsel %vm1533, %v1508, %v1221
        %v1542 = vsel %vm1533, %v1509, %v1223
        %v1543 = vsel %vm1533, %v1510, %v1225
        %v1544 = vsel %vm1533, %v1511, %v1227
        %v1545 = vsel %vm1533, %v1512, %v1229
        %v1546 = vsel %vm1533, %v1513, %v1231
        %v1547 = vsel %vm1533, %v1514, %v1233
        %v1548 = vsel %vm1533, %v1515, %v1235
        %v1549 = vsel %vm1533, %v1516, %v1237
        %v1550 = vsel %vm1533, %v1517, %v1239
        %v1551 = vsel %vm1533, %v1518, %v1241
        %v1552 = vsel %vm1533, %v1519, %v1243
        %v1553 = vsel %vm1533, %v1520, %v1245
        %v1554 = vsel %vm1533, %v1521, %v1247
        %v1555 = vsel %vm1533, %v1522, %v1249
        %v1556 = vsel %vm1533, %v1523, %v1251
        %v1557 = vsel %vm1533, %v1524, %v1253
        %v1558 = vsel %vm1533, %v1525, %v1255
        %v1559 = vsel %vm1533, %v1526, %v1257
        %v1560 = vsel %vm1533, %v1527, %v1259
        %v1561 = vsel %vm1533, %v1528, %v1261
        %v1562 = vsel %vm1533, %v1529, %v1263
        %v1563 = vsel %vm1533, %v1530, %v1265
        %v1564 = vsel %vm1533, %v1531, %v1267
        %v1565 = vsel %vm1533, %v1532, %v1269
        %v1566 = vld [vmem:[#allocation5] sm:$0xff]
        %v1567 = vld [vmem:[#allocation5 + $0x8] sm:$0xff]
        %v1568 = vld [vmem:[#allocation5 + $0x10] sm:$0xff]
        %v1569 = vld [vmem:[#allocation5 + $0x18] sm:$0xff]
        %v1570 = vld [vmem:[#allocation5 + $0x20] sm:$0xf]
        %vm1571 = vcmask 293888
        %v1573 = vsel %vm1571, %v1534, 0
        %v1576 = vsel %vm1571, %v1535, 0
        %v1579 = vsel %vm1571, %v1536, 0
        %v1582 = vsel %vm1571, %v1537, 0
        %v1585 = vsel %vm1571, %v1538, 0
        %v1588 = vsel %vm1571, %v1539, 0
        %v1591 = vsel %vm1571, %v1540, 0
        %v1594 = vsel %vm1571, %v1541, 0
        %v1597 = vsel %vm1571, %v1542, 0
        %v1600 = vsel %vm1571, %v1543, 0
        %v1603 = vsel %vm1571, %v1544, 0
        %v1606 = vsel %vm1571, %v1545, 0
        %v1609 = vsel %vm1571, %v1546, 0
        %v1612 = vsel %vm1571, %v1547, 0
        %v1615 = vsel %vm1571, %v1548, 0
        %v1618 = vsel %vm1571, %v1549, 0
        %v1621 = vsel %vm1571, %v1550, 0
        %v1624 = vsel %vm1571, %v1551, 0
        %v1627 = vsel %vm1571, %v1552, 0
        %v1630 = vsel %vm1571, %v1553, 0
        %v1633 = vsel %vm1571, %v1554, 0
        %v1636 = vsel %vm1571, %v1555, 0
        %v1639 = vsel %vm1571, %v1556, 0
        %v1642 = vsel %vm1571, %v1557, 0
        %v1645 = vsel %vm1571, %v1558, 0
        %v1648 = vsel %vm1571, %v1559, 0
        %v1651 = vsel %vm1571, %v1560, 0
        %v1654 = vsel %vm1571, %v1561, 0
        %v1657 = vsel %vm1571, %v1562, 0
        %v1660 = vsel %vm1571, %v1563, 0
        %v1663 = vsel %vm1571, %v1564, 0
        %v1666 = vsel %vm1571, %v1565, 0
        %vm1668 = vcmask 1043456
        %v1670 = vsel %vm1668, %v1570, 0
        %1672 = vmatprep.subr.mxu0 0.0
        %1673 = vmatpush1.msra.mxu0 %v1566
        %1674 = vmatprep.subr.mxu0 0.0
        %1675 = vmatpush1.msra.mxu0 %v1567
        %1676 = vmatprep.subr.mxu0 0.0
        %1677 = vmatpush1.msra.mxu0 %v1568
        %1678 = vmatprep.subr.mxu0 0.0
        %1679 = vmatpush1.msra.mxu0 %v1569
        %1680 = vmatprep.subr.mxu0 0.0
        %1681 = vmatpush1.msra.mxu0 %v1670
        %1682 = vmatprep.subr.mxu0 0.0
        %1683 = vmatpush1.msra.mxu0 0.0
        %1684 = vmatprep.subr.mxu0 0.0
        %1685 = vmatpush1.msra.mxu0 0.0
        %1686 = vmatprep.subr.mxu0 0.0
        %1687 = vmatpush1.msra.mxu0 0.0
        %1688 = vmatprep.subr.mxu0 0.0
        %1689 = vmatpush1.msra.mxu0 0.0
        %1690 = vmatprep.subr.mxu0 0.0
        %1691 = vmatpush1.msra.mxu0 0.0
        %1692 = vmatprep.subr.mxu0 0.0
        %1693 = vmatpush1.msra.mxu0 0.0
        %1694 = vmatprep.subr.mxu0 0.0
        %1695 = vmatpush1.msra.mxu0 0.0
        %1696 = vmatprep.subr.mxu0 0.0
        %1697 = vmatpush1.msra.mxu0 0.0
        %1698 = vmatprep.subr.mxu0 0.0
        %1699 = vmatpush1.msra.mxu0 0.0
        %1700 = vmatprep.subr.mxu0 0.0
        %1701 = vmatpush1.msra.mxu0 0.0
        %1702 = vmatprep.subr.mxu0 0.0
        %1703 = vmatpush1.msra.mxu0 0.0
        %1704 = vmatprep.subr.mxu0 0.0
        %1705 = vmatpush1.msra.mxu0 0.0
        %1706 = vmatprep.subr.mxu0 0.0
        %1707 = vmatpush1.msra.mxu0 0.0
        %1708 = vmatprep.subr.mxu0 0.0
        %1709 = vmatpush1.msra.mxu0 0.0
        %1710 = vmatprep.subr.mxu0 0.0
        %1711 = vmatpush1.msra.mxu0 0.0
        %1712 = vmatprep.subr.mxu0 0.0
        %1713 = vmatpush1.msra.mxu0 0.0
        %1714 = vmatprep.subr.mxu0 0.0
        %1715 = vmatpush1.msra.mxu0 0.0
        %1716 = vmatprep.subr.mxu0 0.0
        %1717 = vmatpush1.msra.mxu0 0.0
        %1718 = vmatprep.subr.mxu0 0.0
        %1719 = vmatpush1.msra.mxu0 0.0
        %1720 = vmatprep.subr.mxu0 0.0
        %1721 = vmatpush1.msra.mxu0 0.0
        %1722 = vmatprep.subr.mxu0 0.0
        %1723 = vmatpush1.msra.mxu0 0.0
        %1724 = vmatprep.subr.mxu0 0.0
        %1725 = vmatpush1.msra.mxu0 0.0
        %1726 = vmatprep.subr.mxu0 0.0
        %1727 = vmatpush1.msra.mxu0 0.0
        %1728 = vmatprep.subr.mxu0 0.0
        %1729 = vmatpush1.msra.mxu0 0.0
        %1730 = vmatprep.subr.mxu0 0.0
        %1731 = vmatpush1.msra.mxu0 0.0
        %1732 = vmatprep.subr.mxu0 0.0
        %1733 = vmatpush1.msra.mxu0 0.0
        %1734 = vmatprep.subr.mxu0 0.0
        %1735 = vmatpush1.msra.mxu0 0.0
        %1736 = vmatprep.mubr.f32.mxu0 0.0
        %1737 = vmatmul.mubr.f32.gmra.mrb[0].mxu0 %v1573
        %v1738 = vpop.f32.mrb[0].mxu0
        %v1739 = vadd.f32 0.0, %v1738
        %v1740 = vpop.f32.mrb[0].mxu0
        %1741 = vmatprep.mubr.f32.mxu0 0.0
        %1742 = vmatmul.mubr.f32.gmra.mrb[0].mxu0 %v1576
        %v1743 = vpop.f32.mrb[0].mxu0
        %v1744 = vadd.f32 0.0, %v1743
        %v1745 = vpop.f32.mrb[0].mxu0
        %1746 = vmatprep.mubr.f32.mxu0 0.0
        %1747 = vmatmul.mubr.f32.gmra.mrb[0].mxu0 %v1579
        %v1748 = vpop.f32.mrb[0].mxu0
        %v1749 = vadd.f32 0.0, %v1748
        %v1750 = vpop.f32.mrb[0].mxu0
        %1751 = vmatprep.mubr.f32.mxu0 0.0
        %1752 = vmatmul.mubr.f32.gmra.mrb[0].mxu0 %v1582
        %v1753 = vpop.f32.mrb[0].mxu0
        %v1754 = vadd.f32 0.0, %v1753
        %v1755 = vpop.f32.mrb[0].mxu0
        %1756 = vmatprep.mubr.f32.mxu0 0.0
        %1757 = vmatmul.mubr.f32.gmra.mrb[0].mxu0 %v1585
        %v1758 = vpop.f32.mrb[0].mxu0
        %v1759 = vadd.f32 0.0, %v1758
        %v1760 = vpop.f32.mrb[0].mxu0
        %1761 = vmatprep.mubr.f32.mxu0 0.0
        %1762 = vmatmul.mubr.f32.gmra.mrb[0].mxu0 %v1588
        %v1763 = vpop.f32.mrb[0].mxu0
        %v1764 = vadd.f32 0.0, %v1763
        %v1765 = vpop.f32.mrb[0].mxu0
        %1766 = vmatprep.mubr.f32.mxu0 0.0
        %1767 = vmatmul.mubr.f32.gmra.mrb[0].mxu0 %v1591
        %v1768 = vpop.f32.mrb[0].mxu0
        %v1769 = vadd.f32 0.0, %v1768
        %v1770 = vpop.f32.mrb[0].mxu0
        %1771 = vmatprep.mubr.f32.mxu0 0.0
        %1772 = vmatmul.mubr.f32.gmra.mrb[0].mxu0 %v1594
        %v1773 = vpop.f32.mrb[0].mxu0
        %v1774 = vadd.f32 0.0, %v1773
        %v1775 = vpop.f32.mrb[0].mxu0
        %1776 = vmatprep.mubr.f32.mxu0 0.0
        %1777 = vmatmul.mubr.f32.gmra.mrb[0].mxu0 %v1597
        %v1778 = vpop.f32.mrb[0].mxu0
        %v1779 = vadd.f32 0.0, %v1778
        %v1780 = vpop.f32.mrb[0].mxu0
        %1781 = vmatprep.mubr.f32.mxu0 0.0
        %1782 = vmatmul.mubr.f32.gmra.mrb[0].mxu0 %v1600
        %v1783 = vpop.f32.mrb[0].mxu0
        %v1784 = vadd.f32 0.0, %v1783
        %v1785 = vpop.f32.mrb[0].mxu0
        %1786 = vmatprep.mubr.f32.mxu0 0.0
        %1787 = vmatmul.mubr.f32.gmra.mrb[0].mxu0 %v1603
        %v1788 = vpop.f32.mrb[0].mxu0
        %v1789 = vadd.f32 0.0, %v1788
        %v1790 = vpop.f32.mrb[0].mxu0
        %1791 = vmatprep.mubr.f32.mxu0 0.0
        %1792 = vmatmul.mubr.f32.gmra.mrb[0].mxu0 %v1606
        %v1793 = vpop.f32.mrb[0].mxu0
        %v1794 = vadd.f32 0.0, %v1793
        %v1795 = vpop.f32.mrb[0].mxu0
        %1796 = vmatprep.mubr.f32.mxu0 0.0
        %1797 = vmatmul.mubr.f32.gmra.mrb[0].mxu0 %v1609
        %v1798 = vpop.f32.mrb[0].mxu0
        %v1799 = vadd.f32 0.0, %v1798
        %v1800 = vpop.f32.mrb[0].mxu0
        %1801 = vmatprep.mubr.f32.mxu0 0.0
        %1802 = vmatmul.mubr.f32.gmra.mrb[0].mxu0 %v1612
        %v1803 = vpop.f32.mrb[0].mxu0
        %v1804 = vadd.f32 0.0, %v1803
        %v1805 = vpop.f32.mrb[0].mxu0
        %1806 = vmatprep.mubr.f32.mxu0 0.0
        %1807 = vmatmul.mubr.f32.gmra.mrb[0].mxu0 %v1615
        %v1808 = vpop.f32.mrb[0].mxu0
        %v1809 = vadd.f32 0.0, %v1808
        %v1810 = vpop.f32.mrb[0].mxu0
        %1811 = vmatprep.mubr.f32.mxu0 0.0
        %1812 = vmatmul.mubr.f32.gmra.mrb[0].mxu0 %v1618
        %v1813 = vpop.f32.mrb[0].mxu0
        %v1814 = vadd.f32 0.0, %v1813
        %v1815 = vpop.f32.mrb[0].mxu0
        %1816 = vmatprep.mubr.f32.mxu0 0.0
        %1817 = vmatmul.mubr.f32.gmra.mrb[0].mxu0 %v1621
        %v1818 = vpop.f32.mrb[0].mxu0
        %v1819 = vadd.f32 0.0, %v1818
        %v1820 = vpop.f32.mrb[0].mxu0
        %1821 = vmatprep.mubr.f32.mxu0 0.0
        %1822 = vmatmul.mubr.f32.gmra.mrb[0].mxu0 %v1624
        %v1823 = vpop.f32.mrb[0].mxu0
        %v1824 = vadd.f32 0.0, %v1823
        %v1825 = vpop.f32.mrb[0].mxu0
        %1826 = vmatprep.mubr.f32.mxu0 0.0
        %1827 = vmatmul.mubr.f32.gmra.mrb[0].mxu0 %v1627
        %v1828 = vpop.f32.mrb[0].mxu0
        %v1829 = vadd.f32 0.0, %v1828
        %v1830 = vpop.f32.mrb[0].mxu0
        %1831 = vmatprep.mubr.f32.mxu0 0.0
        %1832 = vmatmul.mubr.f32.gmra.mrb[0].mxu0 %v1630
        %v1833 = vpop.f32.mrb[0].mxu0
        %v1834 = vadd.f32 0.0, %v1833
        %v1835 = vpop.f32.mrb[0].mxu0
        %1836 = vmatprep.mubr.f32.mxu0 0.0
        %1837 = vmatmul.mubr.f32.gmra.mrb[0].mxu0 %v1633
        %v1838 = vpop.f32.mrb[0].mxu0
        %v1839 = vadd.f32 0.0, %v1838
        %v1840 = vpop.f32.mrb[0].mxu0
        %1841 = vmatprep.mubr.f32.mxu0 0.0
        %1842 = vmatmul.mubr.f32.gmra.mrb[0].mxu0 %v1636
        %v1843 = vpop.f32.mrb[0].mxu0
        %v1844 = vadd.f32 0.0, %v1843
        %v1845 = vpop.f32.mrb[0].mxu0
        %1846 = vmatprep.mubr.f32.mxu0 0.0
        %1847 = vmatmul.mubr.f32.gmra.mrb[0].mxu0 %v1639
        %v1848 = vpop.f32.mrb[0].mxu0
        %v1849 = vadd.f32 0.0, %v1848
        %v1850 = vpop.f32.mrb[0].mxu0
        %1851 = vmatprep.mubr.f32.mxu0 0.0
        %1852 = vmatmul.mubr.f32.gmra.mrb[0].mxu0 %v1642
        %v1853 = vpop.f32.mrb[0].mxu0
        %v1854 = vadd.f32 0.0, %v1853
        %v1855 = vpop.f32.mrb[0].mxu0
        %1856 = vmatprep.mubr.f32.mxu0 0.0
        %1857 = vmatmul.mubr.f32.gmra.mrb[0].mxu0 %v1645
        %v1858 = vpop.f32.mrb[0].mxu0
        %v1859 = vadd.f32 0.0, %v1858
        %v1860 = vpop.f32.mrb[0].mxu0
        %1861 = vmatprep.mubr.f32.mxu0 0.0
        %1862 = vmatmul.mubr.f32.gmra.mrb[0].mxu0 %v1648
        %v1863 = vpop.f32.mrb[0].mxu0
        %v1864 = vadd.f32 0.0, %v1863
        %v1865 = vpop.f32.mrb[0].mxu0
        %1866 = vmatprep.mubr.f32.mxu0 0.0
        %1867 = vmatmul.mubr.f32.gmra.mrb[0].mxu0 %v1651
        %v1868 = vpop.f32.mrb[0].mxu0
        %v1869 = vadd.f32 0.0, %v1868
        %v1870 = vpop.f32.mrb[0].mxu0
        %1871 = vmatprep.mubr.f32.mxu0 0.0
        %1872 = vmatmul.mubr.f32.gmra.mrb[0].mxu0 %v1654
        %v1873 = vpop.f32.mrb[0].mxu0
        %v1874 = vadd.f32 0.0, %v1873
        %v1875 = vpop.f32.mrb[0].mxu0
        %1876 = vmatprep.mubr.f32.mxu0 0.0
        %1877 = vmatmul.mubr.f32.gmra.mrb[0].mxu0 %v1657
        %v1878 = vpop.f32.mrb[0].mxu0
        %v1879 = vadd.f32 0.0, %v1878
        %v1880 = vpop.f32.mrb[0].mxu0
        %1881 = vmatprep.mubr.f32.mxu0 0.0
        %1882 = vmatmul.mubr.f32.gmra.mrb[0].mxu0 %v1660
        %v1883 = vpop.f32.mrb[0].mxu0
        %v1884 = vadd.f32 0.0, %v1883
        %v1885 = vpop.f32.mrb[0].mxu0
        %1886 = vmatprep.mubr.f32.mxu0 0.0
        %1887 = vmatmul.mubr.f32.gmra.mrb[0].mxu0 %v1663
        %v1888 = vpop.f32.mrb[0].mxu0
        %v1889 = vadd.f32 0.0, %v1888
        %v1890 = vpop.f32.mrb[0].mxu0
        %1891 = vmatprep.mubr.f32.mxu0 0.0
        %1892 = vmatmul.mubr.f32.gmra.mrb[0].mxu0 %v1666
        %v1893 = vpop.f32.mrb[0].mxu0
        %v1894 = vadd.f32 0.0, %v1893
        %v1895 = vpop.f32.mrb[0].mxu0
        %1896 = vdwg.mxu0
        %v1897 = vld [vmem:[#allocation7] sm:$0x1]
        %v1898 = vlaneseq
        %v1899 = vshrl.u32 %v1898, 7
        %v1900 = vsub.s32 0, %v1899
        %v1901 = vrot.slane %v1897, %v1900
        %v1902 = vmul.f32 %v1739, %v1901
        %v1903 = vmul.f32 %v1744, %v1901
        %v1904 = vmul.f32 %v1749, %v1901
        %v1905 = vmul.f32 %v1754, %v1901
        %v1906 = vmul.f32 %v1759, %v1901
        %v1907 = vmul.f32 %v1764, %v1901
        %v1908 = vmul.f32 %v1769, %v1901
        %v1909 = vmul.f32 %v1774, %v1901
        %v1910 = vmul.f32 %v1779, %v1901
        %v1911 = vmul.f32 %v1784, %v1901
        %v1912 = vmul.f32 %v1789, %v1901
        %v1913 = vmul.f32 %v1794, %v1901
        %v1914 = vmul.f32 %v1799, %v1901
        %v1915 = vmul.f32 %v1804, %v1901
        %v1916 = vmul.f32 %v1809, %v1901
        %v1917 = vmul.f32 %v1814, %v1901
        %v1918 = vmul.f32 %v1819, %v1901
        %v1919 = vmul.f32 %v1824, %v1901
        %v1920 = vmul.f32 %v1829, %v1901
        %v1921 = vmul.f32 %v1834, %v1901
        %v1922 = vmul.f32 %v1839, %v1901
        %v1923 = vmul.f32 %v1844, %v1901
        %v1924 = vmul.f32 %v1849, %v1901
        %v1925 = vmul.f32 %v1854, %v1901
        %v1926 = vmul.f32 %v1859, %v1901
        %v1927 = vmul.f32 %v1864, %v1901
        %v1928 = vmul.f32 %v1869, %v1901
        %v1929 = vmul.f32 %v1874, %v1901
        %v1930 = vmul.f32 %v1879, %v1901
        %v1931 = vmul.f32 %v1884, %v1901
        %v1932 = vmul.f32 %v1889, %v1901
        %v1933 = vmul.f32 %v1894, %v1901
        %v1934 = vld [vmem:[#allocation7 + $0x1] sm:$0x1]
        %v1935 = vlaneseq
        %v1936 = vshrl.u32 %v1935, 7
        %v1937 = vsub.s32 0, %v1936
        %v1938 = vrot.slane %v1934, %v1937
        %v1939 = vadd.f32 %v1902, %v1938
        %v1940 = vadd.f32 %v1903, %v1938
        %v1941 = vadd.f32 %v1904, %v1938
        %v1942 = vadd.f32 %v1905, %v1938
        %v1943 = vadd.f32 %v1906, %v1938
        %v1944 = vadd.f32 %v1907, %v1938
        %v1945 = vadd.f32 %v1908, %v1938
        %v1946 = vadd.f32 %v1909, %v1938
        %v1947 = vadd.f32 %v1910, %v1938
        %v1948 = vadd.f32 %v1911, %v1938
        %v1949 = vadd.f32 %v1912, %v1938
        %v1950 = vadd.f32 %v1913, %v1938
        %v1951 = vadd.f32 %v1914, %v1938
        %v1952 = vadd.f32 %v1915, %v1938
        %v1953 = vadd.f32 %v1916, %v1938
        %v1954 = vadd.f32 %v1917, %v1938
        %v1955 = vadd.f32 %v1918, %v1938
        %v1956 = vadd.f32 %v1919, %v1938
        %v1957 = vadd.f32 %v1920, %v1938
        %v1958 = vadd.f32 %v1921, %v1938
        %v1959 = vadd.f32 %v1922, %v1938
        %v1960 = vadd.f32 %v1923, %v1938
        %v1961 = vadd.f32 %v1924, %v1938
        %v1962 = vadd.f32 %v1925, %v1938
        %v1963 = vadd.f32 %v1926, %v1938
        %v1964 = vadd.f32 %v1927, %v1938
        %v1965 = vadd.f32 %v1928, %v1938
        %v1966 = vadd.f32 %v1929, %v1938
        %v1967 = vadd.f32 %v1930, %v1938
        %v1968 = vadd.f32 %v1931, %v1938
        %v1969 = vadd.f32 %v1932, %v1938
        %v1970 = vadd.f32 %v1933, %v1938
        %1971 = vst [vmem:[%s243] sm:$0xff] %v1939
        %1972 = vst [vmem:[%s243 + $0x8] sm:$0xff] %v1940
        %1973 = vst [vmem:[%s243 + $0x10] sm:$0xff] %v1941
        %1974 = vst [vmem:[%s243 + $0x18] sm:$0xff] %v1942
        %1975 = vst [vmem:[%s243 + $0x20] sm:$0xff] %v1943
        %1976 = vst [vmem:[%s243 + $0x28] sm:$0xff] %v1944
        %1977 = vst [vmem:[%s243 + $0x30] sm:$0xff] %v1945
        %1978 = vst [vmem:[%s243 + $0x38] sm:$0xff] %v1946
        %1979 = vst [vmem:[%s243 + $0x40] sm:$0xff] %v1947
        %1980 = vst [vmem:[%s243 + $0x48] sm:$0xff] %v1948
        %1981 = vst [vmem:[%s243 + $0x50] sm:$0xff] %v1949
        %1982 = vst [vmem:[%s243 + $0x58] sm:$0xff] %v1950
        %1983 = vst [vmem:[%s243 + $0x60] sm:$0xff] %v1951
        %1984 = vst [vmem:[%s243 + $0x68] sm:$0xff] %v1952
        %1985 = vst [vmem:[%s243 + $0x70] sm:$0xff] %v1953
        %1986 = vst [vmem:[%s243 + $0x78] sm:$0xff] %v1954
        %1987 = vst [vmem:[%s243 + $0x80] sm:$0xff] %v1955
        %1988 = vst [vmem:[%s243 + $0x88] sm:$0xff] %v1956
        %1989 = vst [vmem:[%s243 + $0x90] sm:$0xff] %v1957
        %1990 = vst [vmem:[%s243 + $0x98] sm:$0xff] %v1958
        %1991 = vst [vmem:[%s243 + $0xa0] sm:$0xff] %v1959
        %1992 = vst [vmem:[%s243 + $0xa8] sm:$0xff] %v1960
        %1993 = vst [vmem:[%s243 + $0xb0] sm:$0xff] %v1961
        %1994 = vst [vmem:[%s243 + $0xb8] sm:$0xff] %v1962
        %1995 = vst [vmem:[%s243 + $0xc0] sm:$0xff] %v1963
        %1996 = vst [vmem:[%s243 + $0xc8] sm:$0xff] %v1964
        %1997 = vst [vmem:[%s243 + $0xd0] sm:$0xff] %v1965
        %1998 = vst [vmem:[%s243 + $0xd8] sm:$0xff] %v1966
        %1999 = vst [vmem:[%s243 + $0xe0] sm:$0xff] %v1967
        %2000 = vst [vmem:[%s243 + $0xe8] sm:$0xff] %v1968
        %2001 = vst [vmem:[%s243 + $0xf0] sm:$0xff] %v1969
        %2002 = vst [vmem:[%s243 + $0xf8] sm:$0xff] %v1970
        %s2003 = sand.u32 %s121, 1
        %s2004 = scalar_lea.sflag [#allocation4], %s2003
        %s2005 = sand.u32 %s121, 1
        %s2006 = smul.addr %s2005, 256
        %s2007 = scalar_lea.vmem [#allocation8], %s2006
        // Predicated region
        $region45: #{tpu_custom_call.1} parent=31 // pred_check
          %p2008 = pneg %p131
        $region46: #{tpu_custom_call.1} parent=31 // pred_check_branch
          %2010 = sbr.rel (%p2008) target = $region48
        $region47: #{tpu_custom_call.1} parent=31 // pred_region
          %s2012 = ssub.s32 4096, 4096
          %2013 = vsyncadd %s2004, %s2012
          %s2014 = smul.addr %s26, 32
          %s2015 = sadd.s32 %s25, %s2014
          %s2016 = smul.addr %s2015, 128
          %s2017 = scalar_lea.hbm %s3, %s2016
          %s2018 = sshll.u32 %s2007, 4
          %s2019 = int_to_ptr.vmem [resolvable:$true] %s2018
          %2024 = dma.vmem_to_hbm [thread:$0]  %s2019, 4096, %s2017, %s2004, 128, 128, 8
        $region48: #{tpu_custom_call.1} parent=31 // pred_fallthru
          _
      $region32: #{tpu_custom_call.1} parent=5 // pred_fallthru
        _
      %p2025 = scmp.le.s32.totalorder 2, %s16
      // Predicated region
      $region49: #{tpu_custom_call.1} parent=5 // pred_check
        %p2026 = pneg %p2025
      $region50: #{tpu_custom_call.1} parent=5 // pred_check_branch
        %2028 = sbr.rel (%p2026) target = $region52
      $region51: #{tpu_custom_call.1} parent=5 // pred_region
        %s2029 = ssub.s32 %s16, 2
        // Predicated region
        $region53: #{tpu_custom_call.1} parent=51 // pred_check
          %p2030 = pneg %p137
        $region54: #{tpu_custom_call.1} parent=51 // pred_check_branch
          %2032 = sbr.rel (%p2030) target = $region56
        $region55: #{tpu_custom_call.1} parent=51 // pred_region
          %s2033 = sand.u32 %s122, 1
          %s2034 = scalar_lea.sflag [#allocation4], %s2033
          %s2035 = sand.u32 %s122, 1
          %s2036 = smul.addr %s2035, 256
          %s2037 = scalar_lea.vmem [#allocation8], %s2036
          %2038 = dma.done %s2034, 4096
        $region56: #{tpu_custom_call.1} parent=51 // pred_fallthru
          _
      $region52: #{tpu_custom_call.1} parent=5 // pred_fallthru
        _
    $region6: #{tpu_custom_call.1} parent=1 // loop_footer
      %s20 = sadd.s32 1, %s16
    $region7: #{tpu_custom_call.1} parent=1 // loop_footer_branch
      %15 = sbr.rel target = $region3
    $region8: #{tpu_custom_call.1} parent=1 // loop_exit
      _
    %2039 = vsyncpa [#allocation3], 1
    %s2040 = scalar_lea.sflag [#allocation3], 1
    %2041 = vsyncpa %s2040, 1
    %2042 = vsyncpa [#allocation6], 1
    %2043 = vsyncpa [#allocation4], 1
    %s2044 = scalar_lea.sflag [#allocation4], 1
    %2045 = vsyncpa %s2044, 1

</llo_original>
